<compile_context>
chip_gen: v5e
topology: v5e:2x2
jax: 0.10.0
libtpu: 0.0.40
codegen_flags: <defaults>
</compile_context>

<pallas_src>
import math
import functools

import jax
import jax.numpy as jnp
from jax.experimental import pallas as pl
from jax.experimental.pallas import tpu as pltpu

# ----- model config (small, consistent with the module) -----
D_MODEL = 32
FF_SIZE = 64
NUM_HEADS = 4
D_K = D_MODEL // NUM_HEADS
BATCH = 2
T_LEN = 8   # target sequence length
S_LEN = 8   # source (encoder) sequence length
EPS = 1e-6


def decoder_layer_kernel(x_ref, enc_ref, ln_ref, wa_ref, w2_ref, b_ref, o_ref,
                         *, num_heads, d_ff, matmul_dtype):
    BB, T, D = x_ref.shape          # whole batch folded into this grid step
    S = enc_ref.shape[1]
    H = num_heads
    DK = D // H
    F = d_ff
    R = BB * T                      # folded decoder token rows
    RS = BB * S                     # folded encoder token rows

    x = x_ref[...].reshape(R, D)      # (R, D) f32   -- leading-dim reshape, free
    enc = enc_ref[...].reshape(RS, D)  # (RS, D) f32

    def layer_norm(v, row):
        # var = E[x^2] - E[x]^2: the two lane reductions issue back-to-back and
        # the (v-mu)^2 VPU pass disappears (kernel is latency-bound).
        w = ln_ref[row:row + 1, :]          # (1, D)
        b = ln_ref[row + 1:row + 2, :]      # (1, D)
        mu = jnp.mean(v, axis=-1, keepdims=True)
        msq = jnp.mean(v * v, axis=-1, keepdims=True)
        var = msq - mu * mu
        return (v - mu) * jax.lax.rsqrt(var + EPS) * w + b

    def mm(a, w):
        # Single full-row 2-D MXU matmul: bf16 operands, f32 accumulation.
        return jnp.dot(a.astype(matmul_dtype), w,
                       preferred_element_type=jnp.float32)

    def attention(q2d, k2d, v2d, nq, nk):
        # q2d: (BB*nq, D), k2d/v2d: (BB*nk, D), all f32 with heads along lanes
        # in PyTorch order.  q2d is pre-scaled by 1/sqrt(DK) (folded into the
        # packed q weights/biases).  Returns (BB*nq, H*DK) merged context.
        def split_heads(m, n):
            # (BB*n, H*DK) -> (H*BB, n, DK): static lane slices of width DK
            # (XLU rotates inside one 128-lane tile) + leading-dim concat.
            m3 = m.reshape(BB, n, H * DK)
            return jnp.concatenate(
                [m3[:, :, h * DK:(h + 1) * DK] for h in range(H)],
                axis=0).astype(matmul_dtype)

        qh = split_heads(q2d, nq)                       # (H*BB, nq, DK)
        kh = split_heads(k2d, nk)                       # (H*BB, nk, DK)
        vh = split_heads(v2d, nk)
        s = jnp.einsum('bqd,bkd->bqk', qh, kh,
                       preferred_element_type=jnp.float32)   # (H*BB, nq, nk)
        s = s - jnp.max(s, axis=-1, keepdims=True)
        e = jnp.exp(s)
        denom = jnp.sum(e, axis=-1, keepdims=True)
        attn = (e * pl.reciprocal(denom, approx=True)).astype(matmul_dtype)
        ctx = jnp.einsum('bqk,bkd->bqd', attn, vh,
                         preferred_element_type=jnp.float32)  # (H*BB, nq, DK)
        # Merge heads back along lanes (PyTorch concat order) so the flat
        # (H*DK, D) output projection folds the head-sum into one contraction.
        return jnp.concatenate(
            [ctx[h * BB:(h + 1) * BB].reshape(BB * nq, DK) for h in range(H)],
            axis=-1)                                          # (BB*nq, H*DK)

    # wa_ref columns: [qkv1 (3D) | q2 (D) | kv2 (2D) | wo1 (D) | wo2 (D) | w1 (F)]
    # ----- self-attention (pre-LN) -----
    x_norm = layer_norm(x, 0)                                        # x_layer_norm
    qkv = mm(x_norm, wa_ref[:, 0:3 * D]) + b_ref[0:1, 0:3 * D]       # (R, 3D)
    ctx1 = attention(qkv[:, 0:D], qkv[:, D:2 * D], qkv[:, 2 * D:3 * D], T, T)
    h1 = mm(ctx1, wa_ref[:, 6 * D:7 * D]) + b_ref[1:2, 0:D] + x      # dropout == id

    # ----- cross-attention -----
    h1_norm = layer_norm(h1, 2)                                      # dec_layer_norm
    q2 = mm(h1_norm, wa_ref[:, 3 * D:4 * D]) + b_ref[0:1, 3 * D:4 * D]   # (R, D)
    kv2 = mm(enc, wa_ref[:, 4 * D:6 * D]) + b_ref[0:1, 4 * D:6 * D]      # (RS, 2D)
    ctx2 = attention(q2, kv2[:, 0:D], kv2[:, D:2 * D], T, S)
    h2 = mm(ctx2, wa_ref[:, 7 * D:8 * D]) + b_ref[2:3, 0:D] + h1

    # ----- position-wise feed forward (pre-LN, residual) -----
    ff_norm = layer_norm(h2, 4)
    ff = jnp.maximum(mm(ff_norm, wa_ref[:, 8 * D:8 * D + F]) + b_ref[3:4, 0:F], 0.0)
    ff = mm(ff, w2_ref[...]) + b_ref[4:5, 0:D]

    # TODO(synk): when T*D grows, emit a lane-dense (BB, T*D) output slab and
    # reshape outside; at 2 KiB the in-kernel relayout isn't worth it.
    o_ref[...] = (h2 + ff).reshape(BB, T, D)


def pack_params(p, matmul_dtype):
    """Pack the 26 module parameters into 4 batch-free operands."""
    D, DK, F = D_MODEL, D_K, FF_SIZE
    s = 1.0 / math.sqrt(DK)   # folded into wq*/bq*

    # LayerNorm params as rows of one (8, D) f32 table:
    # rows 0/1: x_layer_norm, 2/3: dec_layer_norm, 4/5: ffn layer_norm.
    ln = jnp.concatenate([
        p["lnx_w"], p["lnx_b"], p["lnd_w"], p["lnd_b"],
        p["lnf_w"], p["lnf_b"], jnp.zeros((2, D), jnp.float32)], axis=0)

    # One flat weight slab (matmul dtype), rows = D, no per-head/per-batch
    # repacking: the flat (D, D) q/k/v/o matrices already give PyTorch's
    # head-then-d_k lane order, and the flat wo folds the head-sum.
    wa = jnp.concatenate([
        p["wq1"] * s, p["wk1"], p["wv1"],     # fused self QKV   (3D)
        p["wq2"] * s,                         # cross Q          (D)
        p["wk2"], p["wv2"],                   # fused cross KV   (2D)
        p["wo1"], p["wo2"],                   # output projs     (2D)
        p["w1"],                              # FFN up-proj      (F)
    ], axis=1).astype(matmul_dtype)           # (D, 8*D + F)

    w2 = p["w2"].astype(matmul_dtype)         # (F, D) FFN down-proj

    # Bias table (f32): row 0 = fused in-proj biases (matches wa in-proj cols),
    # rows 1..4 = bo1, bo2, b1, b2.
    WB = 6 * D
    b = jnp.zeros((8, WB), jnp.float32)
    b = b.at[0, :].set(jnp.concatenate([
        p["bq1"][0] * s, p["bk1"][0], p["bv1"][0],
        p["bq2"][0] * s, p["bk2"][0], p["bv2"][0]], axis=0))
    b = b.at[1, :D].set(p["bo1"][0])
    b = b.at[2, :D].set(p["bo2"][0])
    b = b.at[3, :F].set(p["b1"][0])
    b = b.at[4, :D].set(p["b2"][0])
    return [ln, wa, w2, b]


def transformer_decoder_layer(x, enc, params, batch_block=None,
                              matmul_dtype=jnp.bfloat16):
    B, T, D = x.shape
    _, S, _ = enc.shape
    H, DK, F = NUM_HEADS, D_K, FF_SIZE

    # Whole batch in ONE grid step by default: splitting the grid (including a
    # v7x two-core split) duplicates the weight DMA, halves the matmul M and
    # adds ~0.35us/step — a net loss until B*T reaches several hundred rows
    # per core.  Pass batch_block explicitly to shard larger problems.
    bb = B if batch_block is None else batch_block
    assert B % bb == 0
    grid = (B // bb,)

    weights = pack_params(params, matmul_dtype)

    def const_spec(shape):
        nd = len(shape)
        # Constant block index -> weights stay resident; never re-DMA'd per step.
        return pl.BlockSpec(shape, lambda i, _nd=nd: (0,) * _nd)

    in_specs = [
        pl.BlockSpec((bb, T, D), lambda i: (i, 0, 0)),   # x
        pl.BlockSpec((bb, S, D), lambda i: (i, 0, 0)),   # enc_output
    ] + [const_spec(w.shape) for w in weights]
    out_spec = pl.BlockSpec((bb, T, D), lambda i: (i, 0, 0))

    # Advisory cost estimate so XLA schedules this tiny custom call sensibly.
    flops = 2 * B * (T * D * 3 * D          # fused self QKV
                     + 2 * H * T * T * DK   # self scores + ctx
                     + T * D * D            # self out proj
                     + T * D * D            # cross Q
                     + S * D * 2 * D        # cross KV
                     + 2 * H * T * S * DK   # cross scores + ctx
                     + T * D * D            # cross out proj
                     + 2 * T * D * F)       # FFN
    transcendentals = B * H * T * (T + S) + 2 * B * H * T + 3 * B * T
    bytes_accessed = int(4 * (x.size + enc.size + B * T * D)
                         + sum(w.size * w.dtype.itemsize for w in weights))

    kernel = functools.partial(decoder_layer_kernel, num_heads=H, d_ff=F,
                               matmul_dtype=matmul_dtype)
    return pl.pallas_call(
        kernel,
        out_shape=jax.ShapeDtypeStruct((B, T, D), jnp.float32),
        grid_spec=pltpu.PrefetchScalarGridSpec(
            num_scalar_prefetch=0,
            grid=grid,
            in_specs=in_specs,
            out_specs=out_spec,
        ),
        compiler_params=pltpu.CompilerParams(
            dimension_semantics=("parallel",)),
        cost_estimate=pl.CostEstimate(
            flops=int(flops),
            transcendentals=int(transcendentals),
            bytes_accessed=int(bytes_accessed)),
    )(x, enc, *weights)


# ----- pure-JAX reference (mirrors the PyTorch forward, eval mode, f32) -----
def reference_forward(x, enc, p):
    def ln(v, w, b):
        mu = jnp.mean(v, axis=-1, keepdims=True)
        var = jnp.mean((v - mu) ** 2, axis=-1, keepdims=True)
        return (v - mu) / jnp.sqrt(var + EPS) * w + b

    def mha(qin, kin, vin, wq, bq, wk, bk, wv, bv, wo, bo):
        B, Tq, D = qin.shape
        Tk = kin.shape[1]
        q = (qin @ wq + bq).reshape(B, Tq, NUM_HEADS, D_K).transpose(0, 2, 1, 3)
        k = (kin @ wk + bk).reshape(B, Tk, NUM_HEADS, D_K).transpose(0, 2, 1, 3)
        v = (vin @ wv + bv).reshape(B, Tk, NUM_HEADS, D_K).transpose(0, 2, 1, 3)
        scores = q @ k.transpose(0, 1, 3, 2) / math.sqrt(D_K)
        attn = jax.nn.softmax(scores, axis=-1)
        ctx = (attn @ v).transpose(0, 2, 1, 3).reshape(B, Tq, D)
        return ctx @ wo + bo

    x_norm = ln(x, p["lnx_w"], p["lnx_b"])
    h1 = mha(x_norm, x_norm, x_norm,
             p["wq1"], p["bq1"], p["wk1"], p["bk1"], p["wv1"], p["bv1"],
             p["wo1"], p["bo1"])
    h1 = h1 + x
    h1_norm = ln(h1, p["lnd_w"], p["lnd_b"])
    h2 = mha(h1_norm, enc, enc,
             p["wq2"], p["bq2"], p["wk2"], p["bk2"], p["wv2"], p["bv2"],
             p["wo2"], p["bo2"])
    h2 = h2 + h1
    ff_norm = ln(h2, p["lnf_w"], p["lnf_b"])
    ff = jnp.maximum(ff_norm @ p["w1"] + p["b1"], 0.0) @ p["w2"] + p["b2"]
    return h2 + ff


def init_params(key):
    keys = jax.random.split(key, 32)
    ki = iter(keys)

    def lin(kin, kout):
        scale = 1.0 / math.sqrt(kin)
        w = jax.random.uniform(next(ki), (kin, kout), jnp.float32, -scale, scale)
        b = jax.random.uniform(next(ki), (1, kout), jnp.float32, -scale, scale)
        return w, b

    p = {}
    p["lnx_w"] = jnp.ones((1, D_MODEL), jnp.float32)
    p["lnx_b"] = jnp.zeros((1, D_MODEL), jnp.float32)
    p["lnd_w"] = jnp.ones((1, D_MODEL), jnp.float32)
    p["lnd_b"] = jnp.zeros((1, D_MODEL), jnp.float32)
    p["lnf_w"] = jnp.ones((1, D_MODEL), jnp.float32)
    p["lnf_b"] = jnp.zeros((1, D_MODEL), jnp.float32)
    for tag in ("1", "2"):
        p["wq" + tag], p["bq" + tag] = lin(D_MODEL, D_MODEL)
        p["wk" + tag], p["bk" + tag] = lin(D_MODEL, D_MODEL)
        p["wv" + tag], p["bv" + tag] = lin(D_MODEL, D_MODEL)
        p["wo" + tag], p["bo" + tag] = lin(D_MODEL, D_MODEL)
    p["w1"], p["b1"] = lin(D_MODEL, FF_SIZE)
    p["w2"], p["b2"] = lin(FF_SIZE, D_MODEL)
    return p


if __name__ == "__main__":
    key = jax.random.PRNGKey(0)
    k_x, k_enc, k_p = jax.random.split(key, 3)

    x = jax.random.normal(k_x, (BATCH, T_LEN, D_MODEL), jnp.float32)
    enc = jax.random.normal(k_enc, (BATCH, S_LEN, D_MODEL), jnp.float32)
    params = init_params(k_p)

    out = jax.block_until_ready(transformer_decoder_layer(x, enc, params))
    ref = reference_forward(x, enc, params)

    assert out.shape == (BATCH, T_LEN, D_MODEL)
    # Tolerance accommodates bf16 MXU operands (review-recommended on
    # v5e/v6e/v7x; ~0.4% relative per operand) plus the EUP approximate
    # reciprocal in the softmax normalization; outputs are O(1).
    assert jnp.allclose(out, ref, atol=5e-2, rtol=5e-2), (
        "mismatch vs reference: max abs err "
        f"{float(jnp.max(jnp.abs(out - ref)))}"
    )
    print("KERNEL_OK")
</pallas_src>

<mosaic_0001>
module attributes {stable_mosaic.version = 11 : i64} {
  func.func @decoder_layer_kernel(%arg0: i32, %arg1: memref<2x8x32xf32, #tpu.memory_space<vmem>>, %arg2: memref<2x8x32xf32, #tpu.memory_space<vmem>>, %arg3: memref<8x32xf32, #tpu.memory_space<vmem>>, %arg4: memref<32x320xbf16, #tpu.memory_space<vmem>>, %arg5: memref<64x32xbf16, #tpu.memory_space<vmem>>, %arg6: memref<8x192xf32, #tpu.memory_space<vmem>>, %arg7: memref<2x8x32xf32, #tpu.memory_space<vmem>>) attributes {dimension_semantics = [#tpu.dimension_semantics<parallel>], iteration_bounds = array<i64: 1>, scalar_prefetch = 0 : i64, scratch_operands = 0 : i64, tpu.core_type = #tpu.core_type<tc>, window_params = [{transform_indices = @transform_0, window_bounds = array<i64: 2, 8, 32>}, {transform_indices = @transform_1, window_bounds = array<i64: 2, 8, 32>}, {pipeline_mode = #tpu.pipeline_mode<synchronous>, transform_indices = @transform_2, window_bounds = array<i64: 8, 32>}, {pipeline_mode = #tpu.pipeline_mode<synchronous>, transform_indices = @transform_3, window_bounds = array<i64: 32, 320>}, {pipeline_mode = #tpu.pipeline_mode<synchronous>, transform_indices = @transform_4, window_bounds = array<i64: 64, 32>}, {pipeline_mode = #tpu.pipeline_mode<synchronous>, transform_indices = @transform_5, window_bounds = array<i64: 8, 192>}, {transform_indices = @transform_6, window_bounds = array<i64: 2, 8, 32>}]} {
    %c0 = arith.constant 0 : index
    %c0_0 = arith.constant 0 : index
    %c0_1 = arith.constant 0 : index
    %0 = vector.load %arg1[%c0, %c0_0, %c0_1] : memref<2x8x32xf32, #tpu.memory_space<vmem>>, vector<2x8x32xf32>
    %1 = vector.shape_cast %0 : vector<2x8x32xf32> to vector<16x32xf32>
    %c0_2 = arith.constant 0 : index
    %c0_3 = arith.constant 0 : index
    %c0_4 = arith.constant 0 : index
    %2 = vector.load %arg2[%c0_2, %c0_3, %c0_4] : memref<2x8x32xf32, #tpu.memory_space<vmem>>, vector<2x8x32xf32>
    %3 = vector.shape_cast %2 : vector<2x8x32xf32> to vector<16x32xf32>
    %c0_5 = arith.constant 0 : index
    %c0_6 = arith.constant 0 : index
    %4 = vector.load %arg3[%c0_5, %c0_6] : memref<8x32xf32, #tpu.memory_space<vmem>>, vector<1x32xf32>
    %c1 = arith.constant 1 : index
    %c0_7 = arith.constant 0 : index
    %5 = vector.load %arg3[%c1, %c0_7] : memref<8x32xf32, #tpu.memory_space<vmem>>, vector<1x32xf32>
    %cst = arith.constant dense<0.000000e+00> : vector<16xf32>
    %6 = vector.multi_reduction <add>, %1, %cst [1] : vector<16x32xf32> to vector<16xf32>
    %7 = vector.shape_cast %6 : vector<16xf32> to vector<16x1xf32>
    %cst_8 = arith.constant 3.200000e+01 : f32
    %8 = vector.broadcast %cst_8 : f32 to vector<16x1xf32>
    %9 = arith.divf %7, %8 : vector<16x1xf32>
    %10 = arith.mulf %1, %1 : vector<16x32xf32>
    %cst_9 = arith.constant dense<0.000000e+00> : vector<16xf32>
    %11 = vector.multi_reduction <add>, %10, %cst_9 [1] : vector<16x32xf32> to vector<16xf32>
    %12 = vector.shape_cast %11 : vector<16xf32> to vector<16x1xf32>
    %cst_10 = arith.constant 3.200000e+01 : f32
    %13 = vector.broadcast %cst_10 : f32 to vector<16x1xf32>
    %14 = arith.divf %12, %13 : vector<16x1xf32>
    %15 = arith.mulf %9, %9 : vector<16x1xf32>
    %16 = arith.subf %14, %15 : vector<16x1xf32>
    %17 = vector.broadcast %9 : vector<16x1xf32> to vector<16x32xf32>
    %18 = arith.subf %1, %17 : vector<16x32xf32>
    %cst_11 = arith.constant 9.99999997E-7 : f32
    %19 = vector.broadcast %cst_11 : f32 to vector<16x1xf32>
    %20 = arith.addf %16, %19 : vector<16x1xf32>
    %21 = math.rsqrt %20 : vector<16x1xf32>
    %22 = vector.broadcast %21 : vector<16x1xf32> to vector<16x32xf32>
    %23 = arith.mulf %18, %22 : vector<16x32xf32>
    %24 = vector.broadcast %4 : vector<1x32xf32> to vector<16x32xf32>
    %25 = arith.mulf %23, %24 : vector<16x32xf32>
    %26 = vector.broadcast %5 : vector<1x32xf32> to vector<16x32xf32>
    %27 = arith.addf %25, %26 : vector<16x32xf32>
    %c0_12 = arith.constant 0 : index
    %c0_13 = arith.constant 0 : index
    %28 = vector.load %arg4[%c0_12, %c0_13] : memref<32x320xbf16, #tpu.memory_space<vmem>>, vector<32x96xbf16>
    %29 = arith.truncf %27 : vector<16x32xf32> to vector<16x32xbf16>
    %cst_14 = arith.constant dense<0.000000e+00> : vector<16x96xf32>
    %30 = tpu.matmul %29, %28, %cst_14 {dimension_numbers = #tpu.dot_dimension_numbers<[1], [0], [0], [1], [0, 0, 1, 1], [], []>} : vector<16x32xbf16>, vector<32x96xbf16>, vector<16x96xf32> -> vector<16x96xf32>
    %c0_15 = arith.constant 0 : index
    %c0_16 = arith.constant 0 : index
    %31 = vector.load %arg6[%c0_15, %c0_16] : memref<8x192xf32, #tpu.memory_space<vmem>>, vector<1x96xf32>
    %32 = vector.broadcast %31 : vector<1x96xf32> to vector<16x96xf32>
    %33 = arith.addf %30, %32 : vector<16x96xf32>
    %34 = vector.extract_strided_slice %33 {offsets = [0, 0], sizes = [16, 32], strides = [1, 1]} : vector<16x96xf32> to vector<16x32xf32>
    %35 = vector.extract_strided_slice %33 {offsets = [0, 32], sizes = [16, 32], strides = [1, 1]} : vector<16x96xf32> to vector<16x32xf32>
    %36 = vector.extract_strided_slice %33 {offsets = [0, 64], sizes = [16, 32], strides = [1, 1]} : vector<16x96xf32> to vector<16x32xf32>
    %37 = vector.shape_cast %34 : vector<16x32xf32> to vector<2x8x32xf32>
    %38 = vector.extract_strided_slice %37 {offsets = [0, 0, 0], sizes = [2, 8, 8], strides = [1, 1, 1]} : vector<2x8x32xf32> to vector<2x8x8xf32>
    %39 = vector.extract_strided_slice %37 {offsets = [0, 0, 8], sizes = [2, 8, 8], strides = [1, 1, 1]} : vector<2x8x32xf32> to vector<2x8x8xf32>
    %40 = vector.extract_strided_slice %37 {offsets = [0, 0, 16], sizes = [2, 8, 8], strides = [1, 1, 1]} : vector<2x8x32xf32> to vector<2x8x8xf32>
    %41 = vector.extract_strided_slice %37 {offsets = [0, 0, 24], sizes = [2, 8, 8], strides = [1, 1, 1]} : vector<2x8x32xf32> to vector<2x8x8xf32>
    %42 = tpu.concatenate %38, %39, %40, %41 in 0 : vector<2x8x8xf32>, vector<2x8x8xf32>, vector<2x8x8xf32>, vector<2x8x8xf32> -> vector<8x8x8xf32>
    %43 = arith.truncf %42 : vector<8x8x8xf32> to vector<8x8x8xbf16>
    %44 = vector.shape_cast %35 : vector<16x32xf32> to vector<2x8x32xf32>
    %45 = vector.extract_strided_slice %44 {offsets = [0, 0, 0], sizes = [2, 8, 8], strides = [1, 1, 1]} : vector<2x8x32xf32> to vector<2x8x8xf32>
    %46 = vector.extract_strided_slice %44 {offsets = [0, 0, 8], sizes = [2, 8, 8], strides = [1, 1, 1]} : vector<2x8x32xf32> to vector<2x8x8xf32>
    %47 = vector.extract_strided_slice %44 {offsets = [0, 0, 16], sizes = [2, 8, 8], strides = [1, 1, 1]} : vector<2x8x32xf32> to vector<2x8x8xf32>
    %48 = vector.extract_strided_slice %44 {offsets = [0, 0, 24], sizes = [2, 8, 8], strides = [1, 1, 1]} : vector<2x8x32xf32> to vector<2x8x8xf32>
    %49 = tpu.concatenate %45, %46, %47, %48 in 0 : vector<2x8x8xf32>, vector<2x8x8xf32>, vector<2x8x8xf32>, vector<2x8x8xf32> -> vector<8x8x8xf32>
    %50 = arith.truncf %49 : vector<8x8x8xf32> to vector<8x8x8xbf16>
    %51 = vector.shape_cast %36 : vector<16x32xf32> to vector<2x8x32xf32>
    %52 = vector.extract_strided_slice %51 {offsets = [0, 0, 0], sizes = [2, 8, 8], strides = [1, 1, 1]} : vector<2x8x32xf32> to vector<2x8x8xf32>
    %53 = vector.extract_strided_slice %51 {offsets = [0, 0, 8], sizes = [2, 8, 8], strides = [1, 1, 1]} : vector<2x8x32xf32> to vector<2x8x8xf32>
    %54 = vector.extract_strided_slice %51 {offsets = [0, 0, 16], sizes = [2, 8, 8], strides = [1, 1, 1]} : vector<2x8x32xf32> to vector<2x8x8xf32>
    %55 = vector.extract_strided_slice %51 {offsets = [0, 0, 24], sizes = [2, 8, 8], strides = [1, 1, 1]} : vector<2x8x32xf32> to vector<2x8x8xf32>
    %56 = tpu.concatenate %52, %53, %54, %55 in 0 : vector<2x8x8xf32>, vector<2x8x8xf32>, vector<2x8x8xf32>, vector<2x8x8xf32> -> vector<8x8x8xf32>
    %57 = arith.truncf %56 : vector<8x8x8xf32> to vector<8x8x8xbf16>
    "tpu.trace_start"() <{level = 10 : i32, message = "bqd,bkd->bqk"}> : () -> ()
    %cst_17 = arith.constant dense<0.000000e+00> : vector<8x8x8xf32>
    %58 = tpu.matmul %43, %50, %cst_17 {dimension_numbers = #tpu.dot_dimension_numbers<[2], [2], [1], [1], [0, 0, 0, 1, 1, 1], [0], [0]>} : vector<8x8x8xbf16>, vector<8x8x8xbf16>, vector<8x8x8xf32> -> vector<8x8x8xf32>
    "tpu.trace_stop"() : () -> ()
    %cst_18 = arith.constant dense<0xFF800000> : vector<8x8xf32>
    %59 = vector.multi_reduction <maximumf>, %58, %cst_18 [2] : vector<8x8x8xf32> to vector<8x8xf32>
    %60 = vector.shape_cast %59 : vector<8x8xf32> to vector<8x8x1xf32>
    %61 = vector.broadcast %60 : vector<8x8x1xf32> to vector<8x8x8xf32>
    %62 = arith.subf %58, %61 : vector<8x8x8xf32>
    %63 = math.exp %62 : vector<8x8x8xf32>
    %cst_19 = arith.constant dense<0.000000e+00> : vector<8x8xf32>
    %64 = vector.multi_reduction <add>, %63, %cst_19 [2] : vector<8x8x8xf32> to vector<8x8xf32>
    %65 = vector.shape_cast %64 : vector<8x8xf32> to vector<8x8x1xf32>
    %66 = tpu.reciprocal %65 {approx = true} : vector<8x8x1xf32> -> vector<8x8x1xf32>
    %67 = vector.broadcast %66 : vector<8x8x1xf32> to vector<8x8x8xf32>
    %68 = arith.mulf %63, %67 : vector<8x8x8xf32>
    %69 = arith.truncf %68 : vector<8x8x8xf32> to vector<8x8x8xbf16>
    "tpu.trace_start"() <{level = 10 : i32, message = "bqk,bkd->bqd"}> : () -> ()
    %cst_20 = arith.constant dense<0.000000e+00> : vector<8x8x8xf32>
    %70 = tpu.matmul %69, %57, %cst_20 {dimension_numbers = #tpu.dot_dimension_numbers<[2], [1], [1], [2], [0, 0, 0, 1, 1, 2], [0], [0]>} : vector<8x8x8xbf16>, vector<8x8x8xbf16>, vector<8x8x8xf32> -> vector<8x8x8xf32>
    "tpu.trace_stop"() : () -> ()
    %71 = vector.extract_strided_slice %70 {offsets = [0, 0, 0], sizes = [2, 8, 8], strides = [1, 1, 1]} : vector<8x8x8xf32> to vector<2x8x8xf32>
    %72 = vector.shape_cast %71 : vector<2x8x8xf32> to vector<16x8xf32>
    %73 = vector.extract_strided_slice %70 {offsets = [2, 0, 0], sizes = [2, 8, 8], strides = [1, 1, 1]} : vector<8x8x8xf32> to vector<2x8x8xf32>
    %74 = vector.shape_cast %73 : vector<2x8x8xf32> to vector<16x8xf32>
    %75 = vector.extract_strided_slice %70 {offsets = [4, 0, 0], sizes = [2, 8, 8], strides = [1, 1, 1]} : vector<8x8x8xf32> to vector<2x8x8xf32>
    %76 = vector.shape_cast %75 : vector<2x8x8xf32> to vector<16x8xf32>
    %77 = vector.extract_strided_slice %70 {offsets = [6, 0, 0], sizes = [2, 8, 8], strides = [1, 1, 1]} : vector<8x8x8xf32> to vector<2x8x8xf32>
    %78 = vector.shape_cast %77 : vector<2x8x8xf32> to vector<16x8xf32>
    %79 = tpu.concatenate %72, %74, %76, %78 in 1 : vector<16x8xf32>, vector<16x8xf32>, vector<16x8xf32>, vector<16x8xf32> -> vector<16x32xf32>
    %c0_21 = arith.constant 0 : index
    %c192 = arith.constant 192 : index
    %80 = vector.load %arg4[%c0_21, %c192] : memref<32x320xbf16, #tpu.memory_space<vmem>>, vector<32x32xbf16>
    %81 = arith.truncf %79 : vector<16x32xf32> to vector<16x32xbf16>
    %cst_22 = arith.constant dense<0.000000e+00> : vector<16x32xf32>
    %82 = tpu.matmul %81, %80, %cst_22 {dimension_numbers = #tpu.dot_dimension_numbers<[1], [0], [0], [1], [0, 0, 1, 1], [], []>} : vector<16x32xbf16>, vector<32x32xbf16>, vector<16x32xf32> -> vector<16x32xf32>
    %c1_23 = arith.constant 1 : index
    %c0_24 = arith.constant 0 : index
    %83 = vector.load %arg6[%c1_23, %c0_24] : memref<8x192xf32, #tpu.memory_space<vmem>>, vector<1x32xf32>
    %84 = vector.broadcast %83 : vector<1x32xf32> to vector<16x32xf32>
    %85 = arith.addf %82, %84 : vector<16x32xf32>
    %86 = arith.addf %85, %1 : vector<16x32xf32>
    %c2 = arith.constant 2 : index
    %c0_25 = arith.constant 0 : index
    %87 = vector.load %arg3[%c2, %c0_25] : memref<8x32xf32, #tpu.memory_space<vmem>>, vector<1x32xf32>
    %c3 = arith.constant 3 : index
    %c0_26 = arith.constant 0 : index
    %88 = vector.load %arg3[%c3, %c0_26] : memref<8x32xf32, #tpu.memory_space<vmem>>, vector<1x32xf32>
    %cst_27 = arith.constant dense<0.000000e+00> : vector<16xf32>
    %89 = vector.multi_reduction <add>, %86, %cst_27 [1] : vector<16x32xf32> to vector<16xf32>
    %90 = vector.shape_cast %89 : vector<16xf32> to vector<16x1xf32>
    %cst_28 = arith.constant 3.200000e+01 : f32
    %91 = vector.broadcast %cst_28 : f32 to vector<16x1xf32>
    %92 = arith.divf %90, %91 : vector<16x1xf32>
    %93 = arith.mulf %86, %86 : vector<16x32xf32>
    %cst_29 = arith.constant dense<0.000000e+00> : vector<16xf32>
    %94 = vector.multi_reduction <add>, %93, %cst_29 [1] : vector<16x32xf32> to vector<16xf32>
    %95 = vector.shape_cast %94 : vector<16xf32> to vector<16x1xf32>
    %cst_30 = arith.constant 3.200000e+01 : f32
    %96 = vector.broadcast %cst_30 : f32 to vector<16x1xf32>
    %97 = arith.divf %95, %96 : vector<16x1xf32>
    %98 = arith.mulf %92, %92 : vector<16x1xf32>
    %99 = arith.subf %97, %98 : vector<16x1xf32>
    %100 = vector.broadcast %92 : vector<16x1xf32> to vector<16x32xf32>
    %101 = arith.subf %86, %100 : vector<16x32xf32>
    %cst_31 = arith.constant 9.99999997E-7 : f32
    %102 = vector.broadcast %cst_31 : f32 to vector<16x1xf32>
    %103 = arith.addf %99, %102 : vector<16x1xf32>
    %104 = math.rsqrt %103 : vector<16x1xf32>
    %105 = vector.broadcast %104 : vector<16x1xf32> to vector<16x32xf32>
    %106 = arith.mulf %101, %105 : vector<16x32xf32>
    %107 = vector.broadcast %87 : vector<1x32xf32> to vector<16x32xf32>
    %108 = arith.mulf %106, %107 : vector<16x32xf32>
    %109 = vector.broadcast %88 : vector<1x32xf32> to vector<16x32xf32>
    %110 = arith.addf %108, %109 : vector<16x32xf32>
    %c0_32 = arith.constant 0 : index
    %c96 = arith.constant 96 : index
    %111 = vector.load %arg4[%c0_32, %c96] : memref<32x320xbf16, #tpu.memory_space<vmem>>, vector<32x32xbf16>
    %112 = arith.truncf %110 : vector<16x32xf32> to vector<16x32xbf16>
    %cst_33 = arith.constant dense<0.000000e+00> : vector<16x32xf32>
    %113 = tpu.matmul %112, %111, %cst_33 {dimension_numbers = #tpu.dot_dimension_numbers<[1], [0], [0], [1], [0, 0, 1, 1], [], []>} : vector<16x32xbf16>, vector<32x32xbf16>, vector<16x32xf32> -> vector<16x32xf32>
    %c0_34 = arith.constant 0 : index
    %c96_35 = arith.constant 96 : index
    %114 = vector.load %arg6[%c0_34, %c96_35] : memref<8x192xf32, #tpu.memory_space<vmem>>, vector<1x32xf32>
    %115 = vector.broadcast %114 : vector<1x32xf32> to vector<16x32xf32>
    %116 = arith.addf %113, %115 : vector<16x32xf32>
    %c0_36 = arith.constant 0 : index
    %c128 = arith.constant 128 : index
    %117 = vector.load %arg4[%c0_36, %c128] : memref<32x320xbf16, #tpu.memory_space<vmem>>, vector<32x64xbf16>
    %118 = arith.truncf %3 : vector<16x32xf32> to vector<16x32xbf16>
    %cst_37 = arith.constant dense<0.000000e+00> : vector<16x64xf32>
    %119 = tpu.matmul %118, %117, %cst_37 {dimension_numbers = #tpu.dot_dimension_numbers<[1], [0], [0], [1], [0, 0, 1, 1], [], []>} : vector<16x32xbf16>, vector<32x64xbf16>, vector<16x64xf32> -> vector<16x64xf32>
    %c0_38 = arith.constant 0 : index
    %c128_39 = arith.constant 128 : index
    %120 = vector.load %arg6[%c0_38, %c128_39] : memref<8x192xf32, #tpu.memory_space<vmem>>, vector<1x64xf32>
    %121 = vector.broadcast %120 : vector<1x64xf32> to vector<16x64xf32>
    %122 = arith.addf %119, %121 : vector<16x64xf32>
    %123 = vector.extract_strided_slice %122 {offsets = [0, 0], sizes = [16, 32], strides = [1, 1]} : vector<16x64xf32> to vector<16x32xf32>
    %124 = vector.extract_strided_slice %122 {offsets = [0, 32], sizes = [16, 32], strides = [1, 1]} : vector<16x64xf32> to vector<16x32xf32>
    %125 = vector.shape_cast %116 : vector<16x32xf32> to vector<2x8x32xf32>
    %126 = vector.extract_strided_slice %125 {offsets = [0, 0, 0], sizes = [2, 8, 8], strides = [1, 1, 1]} : vector<2x8x32xf32> to vector<2x8x8xf32>
    %127 = vector.extract_strided_slice %125 {offsets = [0, 0, 8], sizes = [2, 8, 8], strides = [1, 1, 1]} : vector<2x8x32xf32> to vector<2x8x8xf32>
    %128 = vector.extract_strided_slice %125 {offsets = [0, 0, 16], sizes = [2, 8, 8], strides = [1, 1, 1]} : vector<2x8x32xf32> to vector<2x8x8xf32>
    %129 = vector.extract_strided_slice %125 {offsets = [0, 0, 24], sizes = [2, 8, 8], strides = [1, 1, 1]} : vector<2x8x32xf32> to vector<2x8x8xf32>
    %130 = tpu.concatenate %126, %127, %128, %129 in 0 : vector<2x8x8xf32>, vector<2x8x8xf32>, vector<2x8x8xf32>, vector<2x8x8xf32> -> vector<8x8x8xf32>
    %131 = arith.truncf %130 : vector<8x8x8xf32> to vector<8x8x8xbf16>
    %132 = vector.shape_cast %123 : vector<16x32xf32> to vector<2x8x32xf32>
    %133 = vector.extract_strided_slice %132 {offsets = [0, 0, 0], sizes = [2, 8, 8], strides = [1, 1, 1]} : vector<2x8x32xf32> to vector<2x8x8xf32>
    %134 = vector.extract_strided_slice %132 {offsets = [0, 0, 8], sizes = [2, 8, 8], strides = [1, 1, 1]} : vector<2x8x32xf32> to vector<2x8x8xf32>
    %135 = vector.extract_strided_slice %132 {offsets = [0, 0, 16], sizes = [2, 8, 8], strides = [1, 1, 1]} : vector<2x8x32xf32> to vector<2x8x8xf32>
    %136 = vector.extract_strided_slice %132 {offsets = [0, 0, 24], sizes = [2, 8, 8], strides = [1, 1, 1]} : vector<2x8x32xf32> to vector<2x8x8xf32>
    %137 = tpu.concatenate %133, %134, %135, %136 in 0 : vector<2x8x8xf32>, vector<2x8x8xf32>, vector<2x8x8xf32>, vector<2x8x8xf32> -> vector<8x8x8xf32>
    %138 = arith.truncf %137 : vector<8x8x8xf32> to vector<8x8x8xbf16>
    %139 = vector.shape_cast %124 : vector<16x32xf32> to vector<2x8x32xf32>
    %140 = vector.extract_strided_slice %139 {offsets = [0, 0, 0], sizes = [2, 8, 8], strides = [1, 1, 1]} : vector<2x8x32xf32> to vector<2x8x8xf32>
    %141 = vector.extract_strided_slice %139 {offsets = [0, 0, 8], sizes = [2, 8, 8], strides = [1, 1, 1]} : vector<2x8x32xf32> to vector<2x8x8xf32>
    %142 = vector.extract_strided_slice %139 {offsets = [0, 0, 16], sizes = [2, 8, 8], strides = [1, 1, 1]} : vector<2x8x32xf32> to vector<2x8x8xf32>
    %143 = vector.extract_strided_slice %139 {offsets = [0, 0, 24], sizes = [2, 8, 8], strides = [1, 1, 1]} : vector<2x8x32xf32> to vector<2x8x8xf32>
    %144 = tpu.concatenate %140, %141, %142, %143 in 0 : vector<2x8x8xf32>, vector<2x8x8xf32>, vector<2x8x8xf32>, vector<2x8x8xf32> -> vector<8x8x8xf32>
    %145 = arith.truncf %144 : vector<8x8x8xf32> to vector<8x8x8xbf16>
    "tpu.trace_start"() <{level = 10 : i32, message = "bqd,bkd->bqk"}> : () -> ()
    %cst_40 = arith.constant dense<0.000000e+00> : vector<8x8x8xf32>
    %146 = tpu.matmul %131, %138, %cst_40 {dimension_numbers = #tpu.dot_dimension_numbers<[2], [2], [1], [1], [0, 0, 0, 1, 1, 1], [0], [0]>} : vector<8x8x8xbf16>, vector<8x8x8xbf16>, vector<8x8x8xf32> -> vector<8x8x8xf32>
    "tpu.trace_stop"() : () -> ()
    %cst_41 = arith.constant dense<0xFF800000> : vector<8x8xf32>
    %147 = vector.multi_reduction <maximumf>, %146, %cst_41 [2] : vector<8x8x8xf32> to vector<8x8xf32>
    %148 = vector.shape_cast %147 : vector<8x8xf32> to vector<8x8x1xf32>
    %149 = vector.broadcast %148 : vector<8x8x1xf32> to vector<8x8x8xf32>
    %150 = arith.subf %146, %149 : vector<8x8x8xf32>
    %151 = math.exp %150 : vector<8x8x8xf32>
    %cst_42 = arith.constant dense<0.000000e+00> : vector<8x8xf32>
    %152 = vector.multi_reduction <add>, %151, %cst_42 [2] : vector<8x8x8xf32> to vector<8x8xf32>
    %153 = vector.shape_cast %152 : vector<8x8xf32> to vector<8x8x1xf32>
    %154 = tpu.reciprocal %153 {approx = true} : vector<8x8x1xf32> -> vector<8x8x1xf32>
    %155 = vector.broadcast %154 : vector<8x8x1xf32> to vector<8x8x8xf32>
    %156 = arith.mulf %151, %155 : vector<8x8x8xf32>
    %157 = arith.truncf %156 : vector<8x8x8xf32> to vector<8x8x8xbf16>
    "tpu.trace_start"() <{level = 10 : i32, message = "bqk,bkd->bqd"}> : () -> ()
    %cst_43 = arith.constant dense<0.000000e+00> : vector<8x8x8xf32>
    %158 = tpu.matmul %157, %145, %cst_43 {dimension_numbers = #tpu.dot_dimension_numbers<[2], [1], [1], [2], [0, 0, 0, 1, 1, 2], [0], [0]>} : vector<8x8x8xbf16>, vector<8x8x8xbf16>, vector<8x8x8xf32> -> vector<8x8x8xf32>
    "tpu.trace_stop"() : () -> ()
    %159 = vector.extract_strided_slice %158 {offsets = [0, 0, 0], sizes = [2, 8, 8], strides = [1, 1, 1]} : vector<8x8x8xf32> to vector<2x8x8xf32>
    %160 = vector.shape_cast %159 : vector<2x8x8xf32> to vector<16x8xf32>
    %161 = vector.extract_strided_slice %158 {offsets = [2, 0, 0], sizes = [2, 8, 8], strides = [1, 1, 1]} : vector<8x8x8xf32> to vector<2x8x8xf32>
    %162 = vector.shape_cast %161 : vector<2x8x8xf32> to vector<16x8xf32>
    %163 = vector.extract_strided_slice %158 {offsets = [4, 0, 0], sizes = [2, 8, 8], strides = [1, 1, 1]} : vector<8x8x8xf32> to vector<2x8x8xf32>
    %164 = vector.shape_cast %163 : vector<2x8x8xf32> to vector<16x8xf32>
    %165 = vector.extract_strided_slice %158 {offsets = [6, 0, 0], sizes = [2, 8, 8], strides = [1, 1, 1]} : vector<8x8x8xf32> to vector<2x8x8xf32>
    %166 = vector.shape_cast %165 : vector<2x8x8xf32> to vector<16x8xf32>
    %167 = tpu.concatenate %160, %162, %164, %166 in 1 : vector<16x8xf32>, vector<16x8xf32>, vector<16x8xf32>, vector<16x8xf32> -> vector<16x32xf32>
    %c0_44 = arith.constant 0 : index
    %c224 = arith.constant 224 : index
    %168 = vector.load %arg4[%c0_44, %c224] : memref<32x320xbf16, #tpu.memory_space<vmem>>, vector<32x32xbf16>
    %169 = arith.truncf %167 : vector<16x32xf32> to vector<16x32xbf16>
    %cst_45 = arith.constant dense<0.000000e+00> : vector<16x32xf32>
    %170 = tpu.matmul %169, %168, %cst_45 {dimension_numbers = #tpu.dot_dimension_numbers<[1], [0], [0], [1], [0, 0, 1, 1], [], []>} : vector<16x32xbf16>, vector<32x32xbf16>, vector<16x32xf32> -> vector<16x32xf32>
    %c2_46 = arith.constant 2 : index
    %c0_47 = arith.constant 0 : index
    %171 = vector.load %arg6[%c2_46, %c0_47] : memref<8x192xf32, #tpu.memory_space<vmem>>, vector<1x32xf32>
    %172 = vector.broadcast %171 : vector<1x32xf32> to vector<16x32xf32>
    %173 = arith.addf %170, %172 : vector<16x32xf32>
    %174 = arith.addf %173, %86 : vector<16x32xf32>
    %c4 = arith.constant 4 : index
    %c0_48 = arith.constant 0 : index
    %175 = vector.load %arg3[%c4, %c0_48] : memref<8x32xf32, #tpu.memory_space<vmem>>, vector<1x32xf32>
    %c5 = arith.constant 5 : index
    %c0_49 = arith.constant 0 : index
    %176 = vector.load %arg3[%c5, %c0_49] : memref<8x32xf32, #tpu.memory_space<vmem>>, vector<1x32xf32>
    %cst_50 = arith.constant dense<0.000000e+00> : vector<16xf32>
    %177 = vector.multi_reduction <add>, %174, %cst_50 [1] : vector<16x32xf32> to vector<16xf32>
    %178 = vector.shape_cast %177 : vector<16xf32> to vector<16x1xf32>
    %cst_51 = arith.constant 3.200000e+01 : f32
    %179 = vector.broadcast %cst_51 : f32 to vector<16x1xf32>
    %180 = arith.divf %178, %179 : vector<16x1xf32>
    %181 = arith.mulf %174, %174 : vector<16x32xf32>
    %cst_52 = arith.constant dense<0.000000e+00> : vector<16xf32>
    %182 = vector.multi_reduction <add>, %181, %cst_52 [1] : vector<16x32xf32> to vector<16xf32>
    %183 = vector.shape_cast %182 : vector<16xf32> to vector<16x1xf32>
    %cst_53 = arith.constant 3.200000e+01 : f32
    %184 = vector.broadcast %cst_53 : f32 to vector<16x1xf32>
    %185 = arith.divf %183, %184 : vector<16x1xf32>
    %186 = arith.mulf %180, %180 : vector<16x1xf32>
    %187 = arith.subf %185, %186 : vector<16x1xf32>
    %188 = vector.broadcast %180 : vector<16x1xf32> to vector<16x32xf32>
    %189 = arith.subf %174, %188 : vector<16x32xf32>
    %cst_54 = arith.constant 9.99999997E-7 : f32
    %190 = vector.broadcast %cst_54 : f32 to vector<16x1xf32>
    %191 = arith.addf %187, %190 : vector<16x1xf32>
    %192 = math.rsqrt %191 : vector<16x1xf32>
    %193 = vector.broadcast %192 : vector<16x1xf32> to vector<16x32xf32>
    %194 = arith.mulf %189, %193 : vector<16x32xf32>
    %195 = vector.broadcast %175 : vector<1x32xf32> to vector<16x32xf32>
    %196 = arith.mulf %194, %195 : vector<16x32xf32>
    %197 = vector.broadcast %176 : vector<1x32xf32> to vector<16x32xf32>
    %198 = arith.addf %196, %197 : vector<16x32xf32>
    %c0_55 = arith.constant 0 : index
    %c256 = arith.constant 256 : index
    %199 = vector.load %arg4[%c0_55, %c256] : memref<32x320xbf16, #tpu.memory_space<vmem>>, vector<32x64xbf16>
    %200 = arith.truncf %198 : vector<16x32xf32> to vector<16x32xbf16>
    %cst_56 = arith.constant dense<0.000000e+00> : vector<16x64xf32>
    %201 = tpu.matmul %200, %199, %cst_56 {dimension_numbers = #tpu.dot_dimension_numbers<[1], [0], [0], [1], [0, 0, 1, 1], [], []>} : vector<16x32xbf16>, vector<32x64xbf16>, vector<16x64xf32> -> vector<16x64xf32>
    %c3_57 = arith.constant 3 : index
    %c0_58 = arith.constant 0 : index
    %202 = vector.load %arg6[%c3_57, %c0_58] : memref<8x192xf32, #tpu.memory_space<vmem>>, vector<1x64xf32>
    %203 = vector.broadcast %202 : vector<1x64xf32> to vector<16x64xf32>
    %204 = arith.addf %201, %203 : vector<16x64xf32>
    %cst_59 = arith.constant 0.000000e+00 : f32
    %205 = vector.broadcast %cst_59 : f32 to vector<16x64xf32>
    %206 = arith.maximumf %204, %205 : vector<16x64xf32>
    %c0_60 = arith.constant 0 : index
    %c0_61 = arith.constant 0 : index
    %207 = vector.load %arg5[%c0_60, %c0_61] : memref<64x32xbf16, #tpu.memory_space<vmem>>, vector<64x32xbf16>
    %208 = arith.truncf %206 : vector<16x64xf32> to vector<16x64xbf16>
    %cst_62 = arith.constant dense<0.000000e+00> : vector<16x32xf32>
    %209 = tpu.matmul %208, %207, %cst_62 {dimension_numbers = #tpu.dot_dimension_numbers<[1], [0], [0], [1], [0, 0, 1, 1], [], []>} : vector<16x64xbf16>, vector<64x32xbf16>, vector<16x32xf32> -> vector<16x32xf32>
    %c4_63 = arith.constant 4 : index
    %c0_64 = arith.constant 0 : index
    %210 = vector.load %arg6[%c4_63, %c0_64] : memref<8x192xf32, #tpu.memory_space<vmem>>, vector<1x32xf32>
    %211 = vector.broadcast %210 : vector<1x32xf32> to vector<16x32xf32>
    %212 = arith.addf %209, %211 : vector<16x32xf32>
    %213 = arith.addf %174, %212 : vector<16x32xf32>
    %214 = vector.shape_cast %213 : vector<16x32xf32> to vector<2x8x32xf32>
    %c0_65 = arith.constant 0 : index
    %c0_66 = arith.constant 0 : index
    %c0_67 = arith.constant 0 : index
    %215 = vector.load %arg7[%c0_65, %c0_66, %c0_67] : memref<2x8x32xf32, #tpu.memory_space<vmem>>, vector<2x8x32xf32>
    tpu.vector_store %arg7[%c0_65, %c0_66, %c0_67], %214 {strides = array<i32>} : memref<2x8x32xf32, #tpu.memory_space<vmem>>, vector<2x8x32xf32>,
    return
  }
  func.func @transform_0(%arg0: i32) -> (i32, i32, i32) {
    %c0_i32 = arith.constant 0 : i32
    %c0_i32_0 = arith.constant 0 : i32
    %c0_i32_1 = arith.constant 0 : i32
    return %arg0, %c0_i32, %c0_i32_0 : i32, i32, i32
  }
  func.func @transform_1(%arg0: i32) -> (i32, i32, i32) {
    %c0_i32 = arith.constant 0 : i32
    %c0_i32_0 = arith.constant 0 : i32
    %c0_i32_1 = arith.constant 0 : i32
    return %arg0, %c0_i32, %c0_i32_0 : i32, i32, i32
  }
  func.func @transform_2(%arg0: i32) -> (i32, i32) {
    %c0_i32 = arith.constant 0 : i32
    %c0_i32_0 = arith.constant 0 : i32
    %c0_i32_1 = arith.constant 0 : i32
    return %c0_i32, %c0_i32_0 : i32, i32
  }
  func.func @transform_3(%arg0: i32) -> (i32, i32) {
    %c0_i32 = arith.constant 0 : i32
    %c0_i32_0 = arith.constant 0 : i32
    %c0_i32_1 = arith.constant 0 : i32
    return %c0_i32, %c0_i32_0 : i32, i32
  }
  func.func @transform_4(%arg0: i32) -> (i32, i32) {
    %c0_i32 = arith.constant 0 : i32
    %c0_i32_0 = arith.constant 0 : i32
    %c0_i32_1 = arith.constant 0 : i32
    return %c0_i32, %c0_i32_0 : i32, i32
  }
  func.func @transform_5(%arg0: i32) -> (i32, i32) {
    %c0_i32 = arith.constant 0 : i32
    %c0_i32_0 = arith.constant 0 : i32
    %c0_i32_1 = arith.constant 0 : i32
    return %c0_i32, %c0_i32_0 : i32, i32
  }
  func.func @transform_6(%arg0: i32) -> (i32, i32, i32) {
    %c0_i32 = arith.constant 0 : i32
    %c0_i32_0 = arith.constant 0 : i32
    %c0_i32_1 = arith.constant 0 : i32
    return %arg0, %c0_i32, %c0_i32_0 : i32, i32, i32
  }
}

</mosaic_0001>

<llo_original>
// kernel: tpu_custom_call.1
$region0: #{tpu_custom_call.1}
  #allocation0 [shape = 'u32[]', space=smem, size = 0x4, offset = 0x4, fixed_abs, tag = 'smem constant byte address 0x4 - core index']
  #allocation1 [shape = 'u32[72,128]{1,0:T(1,128)}', space=vmem, size = 0x9000, scoped, tag = 'internal scratch']
  %s0 = inlined_call_operand.hbm [shape: f32[2,8,32], index: 0, kind: input, shape index: {}]
  %s1 = inlined_call_operand.hbm [shape: f32[2,8,32], index: 1, kind: input, shape index: {}]
  %s2 = inlined_call_operand.hbm [shape: f32[8,32], index: 2, kind: input, shape index: {}]
  %s3 = inlined_call_operand.vmem [shape: bf16[32,320], index: 3, kind: input, shape index: {}]
  %s4 = inlined_call_operand.vmem [shape: bf16[64,32], index: 4, kind: input, shape index: {}]
  %s5 = inlined_call_operand.hbm [shape: f32[8,192], index: 5, kind: input, shape index: {}]
  %s6 = inlined_call_operand.hbm [shape: f32[2,8,32], index: 6, kind: output, shape index: {}]
  %s7 = sld [smem:[#allocation0]]
  $region50: #{tpu_custom_call.1} parent=0
    _
  %s9 = ssub.s32 1, %s7
  %s10 = scalar_select 0, %s9, %s7
  $region1: #{tpu_custom_call.1} parent=0
    #allocation2 [shape = 'u8[8192]{0}', space=vmem, size = 0x2000, scoped, tag = 'input window, operand 0, single buffered']
    #allocation3 [shape = 's32[1]{0}', space=sflag, size = 0x4, scoped, tag = 'scoped memory for tpu_custom_call.1']
    #allocation4 [shape = 's32[1]{0}', space=sflag, size = 0x4, scoped, tag = 'scoped memory for tpu_custom_call.1']
    #allocation5 [shape = 'u8[8192]{0}', space=vmem, size = 0x2000, scoped, tag = 'input window, operand 1, single buffered']
    #allocation6 [shape = 's32[1]{0}', space=sflag, size = 0x4, scoped, tag = 'scoped memory for tpu_custom_call.1']
    #allocation7 [shape = 'u8[4096]{0}', space=vmem, size = 0x1000, scoped, tag = 'input window, operand 2, single buffered']
    #allocation8 [shape = 'u8[8192]{0}', space=vmem, size = 0x2000, scoped, tag = 'input window, operand 5, single buffered']
    #allocation9 [shape = 's32[1]{0}', space=sflag, size = 0x4, scoped, tag = 'scoped memory for tpu_custom_call.1']
    #allocation10 [shape = 'u8[8192]{0}', space=vmem, size = 0x2000, scoped, tag = 'output window, operand 0, single buffered']
    %11 = vsyncpa [#allocation3], 0
    %12 = vsyncpa [#allocation6], 0
    %13 = vsyncpa [#allocation9], 0
    %14 = vsyncpa [#allocation4], 0
    // Predicated region
    $region2: #{tpu_custom_call.1} parent=1 // pred_check
      _
    $region3: #{tpu_custom_call.1} parent=1 // pred_check_branch
      %16 = sbr.rel (0) target = $region5
    $region4: #{tpu_custom_call.1} parent=1 // pred_region
      %18 = vsyncadd [#allocation3], 0
      %s19 = sshll.u32 %s0, 4
      %s20 = int_to_ptr.hbm [resolvable:$true] %s19
      %s21 = sshll.u32 [#allocation2], 4
      %s22 = int_to_ptr.vmem [resolvable:$true] %s21
      %27 = dma.hbm_to_vmem [thread:$0]  %s20, 256, %s22, [#allocation3], 128, 128, 8
    $region5: #{tpu_custom_call.1} parent=1 // pred_fallthru
      _
    // Predicated region
    $region6: #{tpu_custom_call.1} parent=1 // pred_check
      _
    $region7: #{tpu_custom_call.1} parent=1 // pred_check_branch
      %29 = sbr.rel (0) target = $region9
    $region8: #{tpu_custom_call.1} parent=1 // pred_region
      %31 = vsyncadd [#allocation6], 0
      %s32 = sshll.u32 %s1, 4
      %s33 = int_to_ptr.hbm [resolvable:$true] %s32
      %s34 = sshll.u32 [#allocation5], 4
      %s35 = int_to_ptr.vmem [resolvable:$true] %s34
      %40 = dma.hbm_to_vmem [thread:$0]  %s33, 256, %s35, [#allocation6], 128, 128, 8
    $region9: #{tpu_custom_call.1} parent=1 // pred_fallthru
      _
    // Predicated region
    $region10: #{tpu_custom_call.1} parent=1 // pred_check
      _
    $region11: #{tpu_custom_call.1} parent=1 // pred_check_branch
      %42 = sbr.rel (0) target = $region13
    $region12: #{tpu_custom_call.1} parent=1 // pred_region
      %44 = vsyncadd [#allocation6], 0
      %s46 = sshll.u32 %s2, 4
      %s47 = int_to_ptr.hbm [resolvable:$true] %s46
      %s48 = sshll.u32 [#allocation7], 4
      %s49 = int_to_ptr.vmem [resolvable:$true] %s48
      %51 = dma.hbm_to_vmem [thread:$0]  %s47, 128, %s49, [#allocation6]
    $region13: #{tpu_custom_call.1} parent=1 // pred_fallthru
      _
    // Predicated region
    $region14: #{tpu_custom_call.1} parent=1 // pred_check
      _
    $region15: #{tpu_custom_call.1} parent=1 // pred_check_branch
      %53 = sbr.rel (0) target = $region17
    $region16: #{tpu_custom_call.1} parent=1 // pred_region
      _
    $region17: #{tpu_custom_call.1} parent=1 // pred_fallthru
      _
    // Predicated region
    $region18: #{tpu_custom_call.1} parent=1 // pred_check
      _
    $region19: #{tpu_custom_call.1} parent=1 // pred_check_branch
      %55 = sbr.rel (0) target = $region21
    $region20: #{tpu_custom_call.1} parent=1 // pred_region
      _
    $region21: #{tpu_custom_call.1} parent=1 // pred_fallthru
      _
    // Predicated region
    $region22: #{tpu_custom_call.1} parent=1 // pred_check
      _
    $region23: #{tpu_custom_call.1} parent=1 // pred_check_branch
      %57 = sbr.rel (0) target = $region25
    $region24: #{tpu_custom_call.1} parent=1 // pred_region
      %59 = vsyncadd [#allocation9], 0
      %s61 = sshll.u32 %s5, 4
      %s62 = int_to_ptr.hbm [resolvable:$true] %s61
      %s63 = sshll.u32 [#allocation8], 4
      %s64 = int_to_ptr.vmem [resolvable:$true] %s63
      %66 = dma.hbm_to_vmem [thread:$0]  %s62, 256, %s64, [#allocation9]
    $region25: #{tpu_custom_call.1} parent=1 // pred_fallthru
      _
    // Predicated region
    $region26: #{tpu_custom_call.1} parent=1 // pred_check
      _
    $region27: #{tpu_custom_call.1} parent=1 // pred_check_branch
      %68 = sbr.rel (0) target = $region29
    $region28: #{tpu_custom_call.1} parent=1 // pred_region
      %70 = dma.done [#allocation3], 256
    $region29: #{tpu_custom_call.1} parent=1 // pred_fallthru
      _
    // Predicated region
    $region30: #{tpu_custom_call.1} parent=1 // pred_check
      _
    $region31: #{tpu_custom_call.1} parent=1 // pred_check_branch
      %72 = sbr.rel (0) target = $region33
    $region32: #{tpu_custom_call.1} parent=1 // pred_region
      %74 = dma.done [#allocation6], 256
    $region33: #{tpu_custom_call.1} parent=1 // pred_fallthru
      _
    // Predicated region
    $region34: #{tpu_custom_call.1} parent=1 // pred_check
      _
    $region35: #{tpu_custom_call.1} parent=1 // pred_check_branch
      %76 = sbr.rel (0) target = $region37
    $region36: #{tpu_custom_call.1} parent=1 // pred_region
      %78 = dma.done [#allocation6], 128
    $region37: #{tpu_custom_call.1} parent=1 // pred_fallthru
      _
    // Predicated region
    $region38: #{tpu_custom_call.1} parent=1 // pred_check
      _
    $region39: #{tpu_custom_call.1} parent=1 // pred_check_branch
      %80 = sbr.rel (0) target = $region41
    $region40: #{tpu_custom_call.1} parent=1 // pred_region
      %82 = dma.done [#allocation9], 256
    $region41: #{tpu_custom_call.1} parent=1 // pred_fallthru
      _
    %v84 = vld [vmem:[#allocation2] sm:$0xff]
    %v85 = vld [vmem:[#allocation2 + $0x8] sm:$0xff]
    %v86 = vld [vmem:[#allocation5] sm:$0xff]
    %v87 = vld [vmem:[#allocation5 + $0x8] sm:$0xff]
    %v88 = vld [vmem:[#allocation7] sm:$0x1]
    %v89 = vld [vmem:[#allocation7 + $0x1] sm:$0x1]
    %vm90 = vcmask 261120
    %v91 = vsel %vm90, %v84, 0.0
    %92 = vadd.xlane.f32.xlu0 %v91
    %v93 = vpop.xlane.xlu0 %92
    %v94 = vsel %vm90, %v85, 0.0
    %95 = vadd.xlane.f32.xlu0 %v94
    %v96 = vpop.xlane.xlu0 %95
    %v97 = vrcp.pop 32.0
    %v98 = vmul.f32 32.0, %v97
    %v99 = vsub.f32 1.0, %v98
    %v100 = vmul.f32 %v97, %v99
    %v101 = vadd.f32 %v97, %v100
    %vm102 = vweird.f32 %v97
    %v103 = vsel %vm102, %v97, %v101
    %v104 = vmul.f32 %v93, %v103
    %v105 = vmul.f32 %v96, %v103
    %v106 = vmul.f32 %v84, %v84
    %v107 = vmul.f32 %v85, %v85
    %v108 = vsel %vm90, %v106, 0.0
    %109 = vadd.xlane.f32.xlu0 %v108
    %v110 = vpop.xlane.xlu0 %109
    %v111 = vsel %vm90, %v107, 0.0
    %112 = vadd.xlane.f32.xlu0 %v111
    %v113 = vpop.xlane.xlu0 %112
    %v114 = vmul.f32 %v110, %v103
    %v115 = vmul.f32 %v113, %v103
    %v116 = vmul.f32 %v104, %v104
    %v117 = vmul.f32 %v105, %v105
    %v118 = vsub.f32 %v114, %v116
    %v119 = vsub.f32 %v115, %v117
    %v120 = vsub.f32 %v84, %v104
    %v121 = vsub.f32 %v85, %v105
    %v122 = vadd.f32 %v118, 1e-06
    %v123 = vadd.f32 %v119, 1e-06
    %v124 = vrsqrt.pop %v122
    %v125 = vmul.f32 %v124, %v122
    %v126 = vmul.f32 %v125, %v124
    %v127 = vmul.f32 0.5, %v126
    %v128 = vsub.f32 1.5, %v127
    %v129 = vmul.f32 %v124, %v128
    %vm130 = vweird.f32 %v122
    %vm131 = vweird.f32 %v124
    %vm132 = vmor %vm130, %vm131
    %v133 = vsel %vm132, %v124, %v129
    %v134 = vrsqrt.pop %v123
    %v135 = vmul.f32 %v134, %v123
    %v136 = vmul.f32 %v135, %v134
    %v137 = vmul.f32 0.5, %v136
    %v138 = vsub.f32 1.5, %v137
    %v139 = vmul.f32 %v134, %v138
    %vm140 = vweird.f32 %v123
    %vm141 = vweird.f32 %v134
    %vm142 = vmor %vm140, %vm141
    %v143 = vsel %vm142, %v134, %v139
    %v144 = vmul.f32 %v120, %v133
    %v145 = vmul.f32 %v121, %v143
    %v146 = vperm.slane %v88, 0
    %v147 = vmul.f32 %v144, %v146
    %v148 = vmul.f32 %v145, %v146
    %v149 = vperm.slane %v89, 0
    %v150 = vadd.f32 %v147, %v149
    %v151 = vadd.f32 %v148, %v149
    %v152 = vld [vmem:[%s3] sm:$0xf]
    %v153 = vld [vmem:[%s3 + $0xc] sm:$0xf]
    %v154 = vld [vmem:[%s3 + $0x18] sm:$0xf]
    %v155 = vld [vmem:[%s3 + $0x24] sm:$0xf]
    %v156 = vpack.c.bf16 %v151, %v150
    %v157 = vld [vmem:[#allocation8] ss:$0 sm:$0xff]
    %v162 = vunpack.c.l.b16 %v152
    %v163 = vunpack.c.l.b16 %v153
    %v164 = vunpack.c.l.b16 %v154
    %v165 = vunpack.c.l.b16 %v155
    %v166 = vpack.c.b16 %v163, %v162
    %v167 = vpack.c.b16 %v165, %v164
    %v171 = vsel %vm90, %v156, 0
    %173 = vmatpush.bf16.msra.mxu0 0
    %174 = vmatpush.bf16.msra.mxu0 0
    %175 = vmatpush.bf16.msra.mxu0 0
    %176 = vmatpush.bf16.msra.mxu0 0
    %177 = vmatpush.bf16.msra.mxu0 0
    %178 = vmatpush.bf16.msra.mxu0 0
    %179 = vmatpush.bf16.msra.mxu0 %v167
    %180 = vmatpush.bf16.msra.mxu0 %v166
    %181 = vmatmul.bf16.gmra.mxu0 %v171
    %v182 = vpop.f32.mrf.mxu0
    %v183 = vadd.f32 %v157, %v182
    %v184 = vpop.f32.mrf.mxu0
    %v185 = vadd.f32 %v157, %v184
    %186 = vdwg.mxu0
    %189 = vrot.lane.b32.xlu0 %v183, 120
    %v190 = vpop.permute.xlu0 %189
    %191 = vrot.lane.b32.xlu0 %v185, 120
    %v192 = vpop.permute.xlu0 %191
    %195 = vrot.lane.b32.xlu0 %v183, 112
    %v196 = vpop.permute.xlu0 %195
    %197 = vrot.lane.b32.xlu0 %v185, 112
    %v198 = vpop.permute.xlu0 %197
    %201 = vrot.lane.b32.xlu0 %v183, 104
    %v202 = vpop.permute.xlu0 %201
    %203 = vrot.lane.b32.xlu0 %v185, 104
    %v204 = vpop.permute.xlu0 %203
    %v207 = vpack.c.bf16 %v183, %v183
    %v208 = vpack.c.bf16 %v185, %v185
    %v209 = vpack.c.bf16 %v190, %v190
    %v210 = vpack.c.bf16 %v192, %v192
    %v211 = vpack.c.bf16 %v196, %v196
    %v212 = vpack.c.bf16 %v198, %v198
    %v213 = vpack.c.bf16 %v202, %v202
    %v214 = vpack.c.bf16 %v204, %v204
    %v216 = vunpack.c.l.b16 %v207
    %v217 = vpack.c.b16 %v216, %v216
    %218 = vrot.lane.b32.xlu0 %v217, 96
    %v219 = vpop.permute.xlu0 %218
    %vm220 = vcmask 64512
    %v222 = vsel %vm220, %v207, 0
    %v225 = vsel %vm220, %v219, 0
    %227 = vmatpush.bf16.xpose.msra.mxu0 0
    %228 = vmatpush.bf16.xpose.msra.mxu0 0
    %229 = vmatpush.bf16.xpose.msra.mxu0 0
    %230 = vmatpush.bf16.xpose.msra.mxu0 0
    %231 = vmatpush.bf16.xpose.msra.mxu0 0
    %232 = vmatpush.bf16.xpose.msra.mxu0 0
    %233 = vmatpush.bf16.xpose.msra.mxu0 0
    %234 = vmatpush.bf16.xpose.msra.mxu0 %v225
    %235 = vmatmul.bf16.gmra.mxu0 %v222
    %v236 = vpop.f32.mrf.mxu0
    %v237 = vadd.f32 0.0, %v236
    %v238 = vpop.f32.mrf.mxu0
    %239 = vdwg.mxu0
    %v241 = vunpack.c.l.b16 %v208
    %v242 = vpack.c.b16 %v241, %v241
    %243 = vrot.lane.b32.xlu0 %v242, 96
    %v244 = vpop.permute.xlu0 %243
    %v246 = vsel %vm220, %v208, 0
    %v249 = vsel %vm220, %v244, 0
    %251 = vmatpush.bf16.xpose.msra.mxu0 0
    %252 = vmatpush.bf16.xpose.msra.mxu0 0
    %253 = vmatpush.bf16.xpose.msra.mxu0 0
    %254 = vmatpush.bf16.xpose.msra.mxu0 0
    %255 = vmatpush.bf16.xpose.msra.mxu0 0
    %256 = vmatpush.bf16.xpose.msra.mxu0 0
    %257 = vmatpush.bf16.xpose.msra.mxu0 0
    %258 = vmatpush.bf16.xpose.msra.mxu0 %v249
    %259 = vmatmul.bf16.gmra.mxu0 %v246
    %v260 = vpop.f32.mrf.mxu0
    %v261 = vadd.f32 0.0, %v260
    %v262 = vpop.f32.mrf.mxu0
    %263 = vdwg.mxu0
    %v265 = vunpack.c.l.b16 %v209
    %v266 = vpack.c.b16 %v265, %v265
    %267 = vrot.lane.b32.xlu0 %v266, 96
    %v268 = vpop.permute.xlu0 %267
    %v270 = vsel %vm220, %v209, 0
    %v273 = vsel %vm220, %v268, 0
    %275 = vmatpush.bf16.xpose.msra.mxu0 0
    %276 = vmatpush.bf16.xpose.msra.mxu0 0
    %277 = vmatpush.bf16.xpose.msra.mxu0 0
    %278 = vmatpush.bf16.xpose.msra.mxu0 0
    %279 = vmatpush.bf16.xpose.msra.mxu0 0
    %280 = vmatpush.bf16.xpose.msra.mxu0 0
    %281 = vmatpush.bf16.xpose.msra.mxu0 0
    %282 = vmatpush.bf16.xpose.msra.mxu0 %v273
    %283 = vmatmul.bf16.gmra.mxu0 %v270
    %v284 = vpop.f32.mrf.mxu0
    %v285 = vadd.f32 0.0, %v284
    %v286 = vpop.f32.mrf.mxu0
    %287 = vdwg.mxu0
    %v289 = vunpack.c.l.b16 %v210
    %v290 = vpack.c.b16 %v289, %v289
    %291 = vrot.lane.b32.xlu0 %v290, 96
    %v292 = vpop.permute.xlu0 %291
    %v294 = vsel %vm220, %v210, 0
    %v297 = vsel %vm220, %v292, 0
    %299 = vmatpush.bf16.xpose.msra.mxu0 0
    %300 = vmatpush.bf16.xpose.msra.mxu0 0
    %301 = vmatpush.bf16.xpose.msra.mxu0 0
    %302 = vmatpush.bf16.xpose.msra.mxu0 0
    %303 = vmatpush.bf16.xpose.msra.mxu0 0
    %304 = vmatpush.bf16.xpose.msra.mxu0 0
    %305 = vmatpush.bf16.xpose.msra.mxu0 0
    %306 = vmatpush.bf16.xpose.msra.mxu0 %v297
    %307 = vmatmul.bf16.gmra.mxu0 %v294
    %v308 = vpop.f32.mrf.mxu0
    %v309 = vadd.f32 0.0, %v308
    %v310 = vpop.f32.mrf.mxu0
    %311 = vdwg.mxu0
    %v313 = vunpack.c.l.b16 %v211
    %v314 = vpack.c.b16 %v313, %v313
    %315 = vrot.lane.b32.xlu0 %v314, 96
    %v316 = vpop.permute.xlu0 %315
    %v318 = vsel %vm220, %v211, 0
    %v321 = vsel %vm220, %v316, 0
    %323 = vmatpush.bf16.xpose.msra.mxu0 0
    %324 = vmatpush.bf16.xpose.msra.mxu0 0
    %325 = vmatpush.bf16.xpose.msra.mxu0 0
    %326 = vmatpush.bf16.xpose.msra.mxu0 0
    %327 = vmatpush.bf16.xpose.msra.mxu0 0
    %328 = vmatpush.bf16.xpose.msra.mxu0 0
    %329 = vmatpush.bf16.xpose.msra.mxu0 0
    %330 = vmatpush.bf16.xpose.msra.mxu0 %v321
    %331 = vmatmul.bf16.gmra.mxu0 %v318
    %v332 = vpop.f32.mrf.mxu0
    %v333 = vadd.f32 0.0, %v332
    %v334 = vpop.f32.mrf.mxu0
    %335 = vdwg.mxu0
    %v337 = vunpack.c.l.b16 %v212
    %v338 = vpack.c.b16 %v337, %v337
    %339 = vrot.lane.b32.xlu0 %v338, 96
    %v340 = vpop.permute.xlu0 %339
    %v342 = vsel %vm220, %v212, 0
    %v345 = vsel %vm220, %v340, 0
    %347 = vmatpush.bf16.xpose.msra.mxu0 0
    %348 = vmatpush.bf16.xpose.msra.mxu0 0
    %349 = vmatpush.bf16.xpose.msra.mxu0 0
    %350 = vmatpush.bf16.xpose.msra.mxu0 0
    %351 = vmatpush.bf16.xpose.msra.mxu0 0
    %352 = vmatpush.bf16.xpose.msra.mxu0 0
    %353 = vmatpush.bf16.xpose.msra.mxu0 0
    %354 = vmatpush.bf16.xpose.msra.mxu0 %v345
    %355 = vmatmul.bf16.gmra.mxu0 %v342
    %v356 = vpop.f32.mrf.mxu0
    %v357 = vadd.f32 0.0, %v356
    %v358 = vpop.f32.mrf.mxu0
    %359 = vdwg.mxu0
    %v361 = vunpack.c.l.b16 %v213
    %v362 = vpack.c.b16 %v361, %v361
    %363 = vrot.lane.b32.xlu0 %v362, 96
    %v364 = vpop.permute.xlu0 %363
    %v366 = vsel %vm220, %v213, 0
    %v369 = vsel %vm220, %v364, 0
    %371 = vmatpush.bf16.xpose.msra.mxu0 0
    %372 = vmatpush.bf16.xpose.msra.mxu0 0
    %373 = vmatpush.bf16.xpose.msra.mxu0 0
    %374 = vmatpush.bf16.xpose.msra.mxu0 0
    %375 = vmatpush.bf16.xpose.msra.mxu0 0
    %376 = vmatpush.bf16.xpose.msra.mxu0 0
    %377 = vmatpush.bf16.xpose.msra.mxu0 0
    %378 = vmatpush.bf16.xpose.msra.mxu0 %v369
    %379 = vmatmul.bf16.gmra.mxu0 %v366
    %v380 = vpop.f32.mrf.mxu0
    %v381 = vadd.f32 0.0, %v380
    %v382 = vpop.f32.mrf.mxu0
    %383 = vdwg.mxu0
    %v385 = vunpack.c.l.b16 %v214
    %v386 = vpack.c.b16 %v385, %v385
    %387 = vrot.lane.b32.xlu0 %v386, 96
    %v388 = vpop.permute.xlu0 %387
    %v390 = vsel %vm220, %v214, 0
    %v393 = vsel %vm220, %v388, 0
    %395 = vmatpush.bf16.xpose.msra.mxu0 0
    %396 = vmatpush.bf16.xpose.msra.mxu0 0
    %397 = vmatpush.bf16.xpose.msra.mxu0 0
    %398 = vmatpush.bf16.xpose.msra.mxu0 0
    %399 = vmatpush.bf16.xpose.msra.mxu0 0
    %400 = vmatpush.bf16.xpose.msra.mxu0 0
    %401 = vmatpush.bf16.xpose.msra.mxu0 0
    %402 = vmatpush.bf16.xpose.msra.mxu0 %v393
    %403 = vmatmul.bf16.gmra.mxu0 %v390
    %v404 = vpop.f32.mrf.mxu0
    %v405 = vadd.f32 0.0, %v404
    %v406 = vpop.f32.mrf.mxu0
    %407 = vdwg.mxu0
    %v408 = vsel %vm220, %v237, -inf
    %409 = vmax.xlane.f32.xlu0 %v408
    %v410 = vpop.xlane.xlu0 %409
    %v411 = vsel %vm220, %v261, -inf
    %412 = vmax.xlane.f32.xlu0 %v411
    %v413 = vpop.xlane.xlu0 %412
    %v414 = vsel %vm220, %v285, -inf
    %415 = vmax.xlane.f32.xlu0 %v414
    %v416 = vpop.xlane.xlu0 %415
    %v417 = vsel %vm220, %v309, -inf
    %418 = vmax.xlane.f32.xlu0 %v417
    %v419 = vpop.xlane.xlu0 %418
    %v420 = vsel %vm220, %v333, -inf
    %421 = vmax.xlane.f32.xlu0 %v420
    %v422 = vpop.xlane.xlu0 %421
    %v423 = vsel %vm220, %v357, -inf
    %424 = vmax.xlane.f32.xlu0 %v423
    %v425 = vpop.xlane.xlu0 %424
    %v426 = vsel %vm220, %v381, -inf
    %427 = vmax.xlane.f32.xlu0 %v426
    %v428 = vpop.xlane.xlu0 %427
    %v429 = vsel %vm220, %v405, -inf
    %430 = vmax.xlane.f32.xlu0 %v429
    %v431 = vpop.xlane.xlu0 %430
    %v432 = vsub.f32 %v237, %v410
    %v433 = vsub.f32 %v261, %v413
    %v434 = vsub.f32 %v285, %v416
    %v435 = vsub.f32 %v309, %v419
    %v436 = vsub.f32 %v333, %v422
    %v437 = vsub.f32 %v357, %v425
    %v438 = vsub.f32 %v381, %v428
    %v439 = vsub.f32 %v405, %v431
    %v440 = vmul.f32 %v432, 1.442695
    %v441 = vpow.pop %v440
    %v442 = vmul.f32 %v433, 1.442695
    %v443 = vpow.pop %v442
    %v444 = vmul.f32 %v434, 1.442695
    %v445 = vpow.pop %v444
    %v446 = vmul.f32 %v435, 1.442695
    %v447 = vpow.pop %v446
    %v448 = vmul.f32 %v436, 1.442695
    %v449 = vpow.pop %v448
    %v450 = vmul.f32 %v437, 1.442695
    %v451 = vpow.pop %v450
    %v452 = vmul.f32 %v438, 1.442695
    %v453 = vpow.pop %v452
    %v454 = vmul.f32 %v439, 1.442695
    %v455 = vpow.pop %v454
    %v456 = vsel %vm220, %v441, 0.0
    %457 = vadd.xlane.f32.xlu0 %v456
    %v458 = vpop.xlane.xlu0 %457
    %v459 = vsel %vm220, %v443, 0.0
    %460 = vadd.xlane.f32.xlu0 %v459
    %v461 = vpop.xlane.xlu0 %460
    %v462 = vsel %vm220, %v445, 0.0
    %463 = vadd.xlane.f32.xlu0 %v462
    %v464 = vpop.xlane.xlu0 %463
    %v465 = vsel %vm220, %v447, 0.0
    %466 = vadd.xlane.f32.xlu0 %v465
    %v467 = vpop.xlane.xlu0 %466
    %v468 = vsel %vm220, %v449, 0.0
    %469 = vadd.xlane.f32.xlu0 %v468
    %v470 = vpop.xlane.xlu0 %469
    %v471 = vsel %vm220, %v451, 0.0
    %472 = vadd.xlane.f32.xlu0 %v471
    %v473 = vpop.xlane.xlu0 %472
    %v474 = vsel %vm220, %v453, 0.0
    %475 = vadd.xlane.f32.xlu0 %v474
    %v476 = vpop.xlane.xlu0 %475
    %v477 = vsel %vm220, %v455, 0.0
    %478 = vadd.xlane.f32.xlu0 %v477
    %v479 = vpop.xlane.xlu0 %478
    %v480 = vrcp.pop %v458
    %v481 = vrcp.pop %v461
    %v482 = vrcp.pop %v464
    %v483 = vrcp.pop %v467
    %v484 = vrcp.pop %v470
    %v485 = vrcp.pop %v473
    %v486 = vrcp.pop %v476
    %v487 = vrcp.pop %v479
    %v488 = vmul.f32 %v441, %v480
    %v489 = vmul.f32 %v443, %v481
    %v490 = vmul.f32 %v445, %v482
    %v491 = vmul.f32 %v447, %v483
    %v492 = vmul.f32 %v449, %v484
    %v493 = vmul.f32 %v451, %v485
    %v494 = vmul.f32 %v453, %v486
    %v495 = vmul.f32 %v455, %v487
    %v496 = vpack.c.bf16 %v488, %v488
    %v497 = vpack.c.bf16 %v489, %v489
    %v498 = vpack.c.bf16 %v490, %v490
    %v499 = vpack.c.bf16 %v491, %v491
    %v500 = vpack.c.bf16 %v492, %v492
    %v501 = vpack.c.bf16 %v493, %v493
    %v502 = vpack.c.bf16 %v494, %v494
    %v503 = vpack.c.bf16 %v495, %v495
    %504 = vrot.lane.b32.xlu0 %v217, 64
    %v505 = vpop.permute.xlu0 %504
    %v507 = vsel %vm220, %v496, 0
    %vm509 = vcmask 1043456
    %v511 = vsel %vm509, %v505, 0
    %513 = vmatpush.bf16.msra.mxu0 0
    %514 = vmatpush.bf16.msra.mxu0 0
    %515 = vmatpush.bf16.msra.mxu0 0
    %516 = vmatpush.bf16.msra.mxu0 0
    %517 = vmatpush.bf16.msra.mxu0 0
    %518 = vmatpush.bf16.msra.mxu0 0
    %519 = vmatpush.bf16.msra.mxu0 0
    %520 = vmatpush.bf16.msra.mxu0 %v511
    %521 = vmatmul.bf16.gmra.mxu0 %v507
    %v522 = vpop.f32.mrf.mxu0
    %v523 = vadd.f32 0.0, %v522
    %v524 = vpop.f32.mrf.mxu0
    %525 = vdwg.mxu0
    %526 = vrot.lane.b32.xlu0 %v242, 64
    %v527 = vpop.permute.xlu0 %526
    %v529 = vsel %vm220, %v497, 0
    %v532 = vsel %vm509, %v527, 0
    %534 = vmatpush.bf16.msra.mxu0 0
    %535 = vmatpush.bf16.msra.mxu0 0
    %536 = vmatpush.bf16.msra.mxu0 0
    %537 = vmatpush.bf16.msra.mxu0 0
    %538 = vmatpush.bf16.msra.mxu0 0
    %539 = vmatpush.bf16.msra.mxu0 0
    %540 = vmatpush.bf16.msra.mxu0 0
    %541 = vmatpush.bf16.msra.mxu0 %v532
    %542 = vmatmul.bf16.gmra.mxu0 %v529
    %v543 = vpop.f32.mrf.mxu0
    %v544 = vadd.f32 0.0, %v543
    %v545 = vpop.f32.mrf.mxu0
    %546 = vdwg.mxu0
    %547 = vrot.lane.b32.xlu0 %v266, 64
    %v548 = vpop.permute.xlu0 %547
    %v550 = vsel %vm220, %v498, 0
    %v553 = vsel %vm509, %v548, 0
    %555 = vmatpush.bf16.msra.mxu0 0
    %556 = vmatpush.bf16.msra.mxu0 0
    %557 = vmatpush.bf16.msra.mxu0 0
    %558 = vmatpush.bf16.msra.mxu0 0
    %559 = vmatpush.bf16.msra.mxu0 0
    %560 = vmatpush.bf16.msra.mxu0 0
    %561 = vmatpush.bf16.msra.mxu0 0
    %562 = vmatpush.bf16.msra.mxu0 %v553
    %563 = vmatmul.bf16.gmra.mxu0 %v550
    %v564 = vpop.f32.mrf.mxu0
    %v565 = vadd.f32 0.0, %v564
    %v566 = vpop.f32.mrf.mxu0
    %567 = vdwg.mxu0
    %568 = vrot.lane.b32.xlu0 %v290, 64
    %v569 = vpop.permute.xlu0 %568
    %v571 = vsel %vm220, %v499, 0
    %v574 = vsel %vm509, %v569, 0
    %576 = vmatpush.bf16.msra.mxu0 0
    %577 = vmatpush.bf16.msra.mxu0 0
    %578 = vmatpush.bf16.msra.mxu0 0
    %579 = vmatpush.bf16.msra.mxu0 0
    %580 = vmatpush.bf16.msra.mxu0 0
    %581 = vmatpush.bf16.msra.mxu0 0
    %582 = vmatpush.bf16.msra.mxu0 0
    %583 = vmatpush.bf16.msra.mxu0 %v574
    %584 = vmatmul.bf16.gmra.mxu0 %v571
    %v585 = vpop.f32.mrf.mxu0
    %v586 = vadd.f32 0.0, %v585
    %v587 = vpop.f32.mrf.mxu0
    %588 = vdwg.mxu0
    %589 = vrot.lane.b32.xlu0 %v314, 64
    %v590 = vpop.permute.xlu0 %589
    %v592 = vsel %vm220, %v500, 0
    %v595 = vsel %vm509, %v590, 0
    %597 = vmatpush.bf16.msra.mxu0 0
    %598 = vmatpush.bf16.msra.mxu0 0
    %599 = vmatpush.bf16.msra.mxu0 0
    %600 = vmatpush.bf16.msra.mxu0 0
    %601 = vmatpush.bf16.msra.mxu0 0
    %602 = vmatpush.bf16.msra.mxu0 0
    %603 = vmatpush.bf16.msra.mxu0 0
    %604 = vmatpush.bf16.msra.mxu0 %v595
    %605 = vmatmul.bf16.gmra.mxu0 %v592
    %v606 = vpop.f32.mrf.mxu0
    %v607 = vadd.f32 0.0, %v606
    %v608 = vpop.f32.mrf.mxu0
    %609 = vdwg.mxu0
    %610 = vrot.lane.b32.xlu0 %v338, 64
    %v611 = vpop.permute.xlu0 %610
    %v613 = vsel %vm220, %v501, 0
    %v616 = vsel %vm509, %v611, 0
    %618 = vmatpush.bf16.msra.mxu0 0
    %619 = vmatpush.bf16.msra.mxu0 0
    %620 = vmatpush.bf16.msra.mxu0 0
    %621 = vmatpush.bf16.msra.mxu0 0
    %622 = vmatpush.bf16.msra.mxu0 0
    %623 = vmatpush.bf16.msra.mxu0 0
    %624 = vmatpush.bf16.msra.mxu0 0
    %625 = vmatpush.bf16.msra.mxu0 %v616
    %626 = vmatmul.bf16.gmra.mxu0 %v613
    %v627 = vpop.f32.mrf.mxu0
    %v628 = vadd.f32 0.0, %v627
    %v629 = vpop.f32.mrf.mxu0
    %630 = vdwg.mxu0
    %631 = vrot.lane.b32.xlu0 %v362, 64
    %v632 = vpop.permute.xlu0 %631
    %v634 = vsel %vm220, %v502, 0
    %v637 = vsel %vm509, %v632, 0
    %639 = vmatpush.bf16.msra.mxu0 0
    %640 = vmatpush.bf16.msra.mxu0 0
    %641 = vmatpush.bf16.msra.mxu0 0
    %642 = vmatpush.bf16.msra.mxu0 0
    %643 = vmatpush.bf16.msra.mxu0 0
    %644 = vmatpush.bf16.msra.mxu0 0
    %645 = vmatpush.bf16.msra.mxu0 0
    %646 = vmatpush.bf16.msra.mxu0 %v637
    %647 = vmatmul.bf16.gmra.mxu0 %v634
    %v648 = vpop.f32.mrf.mxu0
    %v649 = vadd.f32 0.0, %v648
    %v650 = vpop.f32.mrf.mxu0
    %651 = vdwg.mxu0
    %652 = vrot.lane.b32.xlu0 %v386, 64
    %v653 = vpop.permute.xlu0 %652
    %v655 = vsel %vm220, %v503, 0
    %v658 = vsel %vm509, %v653, 0
    %660 = vmatpush.bf16.msra.mxu0 0
    %661 = vmatpush.bf16.msra.mxu0 0
    %662 = vmatpush.bf16.msra.mxu0 0
    %663 = vmatpush.bf16.msra.mxu0 0
    %664 = vmatpush.bf16.msra.mxu0 0
    %665 = vmatpush.bf16.msra.mxu0 0
    %666 = vmatpush.bf16.msra.mxu0 0
    %667 = vmatpush.bf16.msra.mxu0 %v658
    %668 = vmatmul.bf16.gmra.mxu0 %v655
    %v669 = vpop.f32.mrf.mxu0
    %v670 = vadd.f32 0.0, %v669
    %v671 = vpop.f32.mrf.mxu0
    %672 = vdwg.mxu0
    %675 = vrot.lane.b32.xlu0 %v565, 8
    %v676 = vpop.permute.xlu0 %675
    %677 = vrot.lane.b32.xlu0 %v586, 8
    %v678 = vpop.permute.xlu0 %677
    %683 = vrot.lane.b32.xlu0 %v607, 16
    %v684 = vpop.permute.xlu0 %683
    %685 = vrot.lane.b32.xlu0 %v628, 16
    %v686 = vpop.permute.xlu0 %685
    %691 = vrot.lane.b32.xlu0 %v649, 24
    %v692 = vpop.permute.xlu0 %691
    %693 = vrot.lane.b32.xlu0 %v670, 24
    %v694 = vpop.permute.xlu0 %693
    %v697 = vsel %vm220, %v523, %v676
    %v698 = vsel %vm220, %v544, %v678
    %vm699 = vcmask 130048
    %v700 = vsel %vm699, %v697, %v684
    %v701 = vsel %vm699, %v698, %v686
    %vm702 = vcmask 195584
    %v703 = vsel %vm702, %v700, %v692
    %v704 = vsel %vm702, %v701, %v694
    %v705 = vld [vmem:[%s3 + $0x4] sm:$0xf]
    %v706 = vld [vmem:[%s3 + $0x10] sm:$0xf]
    %v707 = vld [vmem:[%s3 + $0x1c] sm:$0xf]
    %v708 = vld [vmem:[%s3 + $0x28] sm:$0xf]
    %v709 = vpack.c.bf16 %v704, %v703
    %v710 = vld [vmem:[#allocation8 + $0x1] ss:$0 sm:$0xff]
    %v715 = vunpack.c.l.b16 %v705
    %v716 = vunpack.c.l.b16 %v706
    %v717 = vunpack.c.l.b16 %v707
    %v718 = vunpack.c.l.b16 %v708
    %v719 = vpack.c.b16 %v716, %v715
    %v720 = vpack.c.b16 %v718, %v717
    %721 = vrot.lane.b32.xlu0 %v719, 64
    %v722 = vpop.permute.xlu0 %721
    %723 = vrot.lane.b32.xlu0 %v720, 64
    %v724 = vpop.permute.xlu0 %723
    %v728 = vsel %vm90, %v709, 0
    %730 = vmatpush.bf16.msra.mxu0 0
    %731 = vmatpush.bf16.msra.mxu0 0
    %732 = vmatpush.bf16.msra.mxu0 0
    %733 = vmatpush.bf16.msra.mxu0 0
    %734 = vmatpush.bf16.msra.mxu0 0
    %735 = vmatpush.bf16.msra.mxu0 0
    %736 = vmatpush.bf16.msra.mxu0 %v724
    %737 = vmatpush.bf16.msra.mxu0 %v722
    %738 = vmatmul.bf16.gmra.mxu0 %v728
    %v739 = vpop.f32.mrf.mxu0
    %v740 = vadd.f32 %v710, %v739
    %v741 = vpop.f32.mrf.mxu0
    %v742 = vadd.f32 %v710, %v741
    %743 = vdwg.mxu0
    %v744 = vadd.f32 %v740, %v84
    %v745 = vadd.f32 %v742, %v85
    %v746 = vld [vmem:[#allocation7 + $0x2] sm:$0x1]
    %v747 = vld [vmem:[#allocation7 + $0x3] sm:$0x1]
    %v748 = vsel %vm90, %v744, 0.0
    %749 = vadd.xlane.f32.xlu0 %v748
    %v750 = vpop.xlane.xlu0 %749
    %v751 = vsel %vm90, %v745, 0.0
    %752 = vadd.xlane.f32.xlu0 %v751
    %v753 = vpop.xlane.xlu0 %752
    %v754 = vmul.f32 %v750, %v103
    %v755 = vmul.f32 %v753, %v103
    %v756 = vmul.f32 %v744, %v744
    %v757 = vmul.f32 %v745, %v745
    %v758 = vsel %vm90, %v756, 0.0
    %759 = vadd.xlane.f32.xlu0 %v758
    %v760 = vpop.xlane.xlu0 %759
    %v761 = vsel %vm90, %v757, 0.0
    %762 = vadd.xlane.f32.xlu0 %v761
    %v763 = vpop.xlane.xlu0 %762
    %v764 = vmul.f32 %v760, %v103
    %v765 = vmul.f32 %v763, %v103
    %v766 = vmul.f32 %v754, %v754
    %v767 = vmul.f32 %v755, %v755
    %v768 = vsub.f32 %v764, %v766
    %v769 = vsub.f32 %v765, %v767
    %v770 = vsub.f32 %v744, %v754
    %v771 = vsub.f32 %v745, %v755
    %v772 = vadd.f32 %v768, 1e-06
    %v773 = vadd.f32 %v769, 1e-06
    %v774 = vrsqrt.pop %v772
    %v775 = vmul.f32 %v774, %v772
    %v776 = vmul.f32 %v775, %v774
    %v777 = vmul.f32 0.5, %v776
    %v778 = vsub.f32 1.5, %v777
    %v779 = vmul.f32 %v774, %v778
    %vm780 = vweird.f32 %v772
    %vm781 = vweird.f32 %v774
    %vm782 = vmor %vm780, %vm781
    %v783 = vsel %vm782, %v774, %v779
    %v784 = vrsqrt.pop %v773
    %v785 = vmul.f32 %v784, %v773
    %v786 = vmul.f32 %v785, %v784
    %v787 = vmul.f32 0.5, %v786
    %v788 = vsub.f32 1.5, %v787
    %v789 = vmul.f32 %v784, %v788
    %vm790 = vweird.f32 %v773
    %vm791 = vweird.f32 %v784
    %vm792 = vmor %vm790, %vm791
    %v793 = vsel %vm792, %v784, %v789
    %v794 = vmul.f32 %v770, %v783
    %v795 = vmul.f32 %v771, %v793
    %v796 = vperm.slane %v746, 0
    %v797 = vmul.f32 %v794, %v796
    %v798 = vmul.f32 %v795, %v796
    %v799 = vperm.slane %v747, 0
    %v800 = vadd.f32 %v797, %v799
    %v801 = vadd.f32 %v798, %v799
    %v802 = vld [vmem:[%s3] sm:$0xf]
    %v803 = vld [vmem:[%s3 + $0xc] sm:$0xf]
    %v804 = vld [vmem:[%s3 + $0x18] sm:$0xf]
    %v805 = vld [vmem:[%s3 + $0x24] sm:$0xf]
    %v806 = vpack.c.bf16 %v801, %v800
    %v807 = vld [vmem:[#allocation8] ss:$0 sm:$0xff]
    %v812 = vunpack.c.l.b16 %v802
    %v813 = vunpack.c.l.b16 %v803
    %v814 = vunpack.c.l.b16 %v804
    %v815 = vunpack.c.l.b16 %v805
    %v816 = vpack.c.b16 %v813, %v812
    %v817 = vpack.c.b16 %v815, %v814
    %818 = vrot.lane.b32.xlu0 %v816, 32
    %v819 = vpop.permute.xlu0 %818
    %820 = vrot.lane.b32.xlu0 %v817, 32
    %v821 = vpop.permute.xlu0 %820
    %825 = vrot.lane.b32.xlu0 %v807, 32
    %v826 = vpop.permute.xlu0 %825
    %v829 = vsel %vm90, %v806, 0
    %831 = vmatpush.bf16.msra.mxu0 0
    %832 = vmatpush.bf16.msra.mxu0 0
    %833 = vmatpush.bf16.msra.mxu0 0
    %834 = vmatpush.bf16.msra.mxu0 0
    %835 = vmatpush.bf16.msra.mxu0 0
    %836 = vmatpush.bf16.msra.mxu0 0
    %837 = vmatpush.bf16.msra.mxu0 %v821
    %838 = vmatpush.bf16.msra.mxu0 %v819
    %839 = vmatmul.bf16.gmra.mxu0 %v829
    %v840 = vpop.f32.mrf.mxu0
    %v841 = vadd.f32 %v826, %v840
    %v842 = vpop.f32.mrf.mxu0
    %v843 = vadd.f32 %v826, %v842
    %844 = vdwg.mxu0
    %v845 = vpack.c.bf16 %v87, %v86
    %v846 = vld [vmem:[#allocation8 + $0x8] ss:$0 sm:$0xff]
    %v850 = vsel %vm90, %v845, 0
    %852 = vmatpush.bf16.msra.mxu0 0
    %853 = vmatpush.bf16.msra.mxu0 0
    %854 = vmatpush.bf16.msra.mxu0 0
    %855 = vmatpush.bf16.msra.mxu0 0
    %856 = vmatpush.bf16.msra.mxu0 0
    %857 = vmatpush.bf16.msra.mxu0 0
    %858 = vmatpush.bf16.msra.mxu0 %v720
    %859 = vmatpush.bf16.msra.mxu0 %v719
    %860 = vmatmul.bf16.gmra.mxu0 %v850
    %v861 = vpop.f32.mrf.mxu0
    %v862 = vadd.f32 %v846, %v861
    %v863 = vpop.f32.mrf.mxu0
    %v864 = vadd.f32 %v846, %v863
    %865 = vdwg.mxu0
    %868 = vrot.lane.b32.xlu0 %v841, 120
    %v869 = vpop.permute.xlu0 %868
    %870 = vrot.lane.b32.xlu0 %v843, 120
    %v871 = vpop.permute.xlu0 %870
    %874 = vrot.lane.b32.xlu0 %v841, 112
    %v875 = vpop.permute.xlu0 %874
    %876 = vrot.lane.b32.xlu0 %v843, 112
    %v877 = vpop.permute.xlu0 %876
    %880 = vrot.lane.b32.xlu0 %v841, 104
    %v881 = vpop.permute.xlu0 %880
    %882 = vrot.lane.b32.xlu0 %v843, 104
    %v883 = vpop.permute.xlu0 %882
    %v886 = vpack.c.bf16 %v841, %v841
    %v887 = vpack.c.bf16 %v843, %v843
    %v888 = vpack.c.bf16 %v869, %v869
    %v889 = vpack.c.bf16 %v871, %v871
    %v890 = vpack.c.bf16 %v875, %v875
    %v891 = vpack.c.bf16 %v877, %v877
    %v892 = vpack.c.bf16 %v881, %v881
    %v893 = vpack.c.bf16 %v883, %v883
    %896 = vrot.lane.b32.xlu0 %v862, 120
    %v897 = vpop.permute.xlu0 %896
    %898 = vrot.lane.b32.xlu0 %v864, 120
    %v899 = vpop.permute.xlu0 %898
    %902 = vrot.lane.b32.xlu0 %v862, 112
    %v903 = vpop.permute.xlu0 %902
    %904 = vrot.lane.b32.xlu0 %v864, 112
    %v905 = vpop.permute.xlu0 %904
    %908 = vrot.lane.b32.xlu0 %v862, 104
    %v909 = vpop.permute.xlu0 %908
    %910 = vrot.lane.b32.xlu0 %v864, 104
    %v911 = vpop.permute.xlu0 %910
    %v914 = vpack.c.bf16 %v862, %v862
    %v915 = vpack.c.bf16 %v864, %v864
    %v916 = vpack.c.bf16 %v897, %v897
    %v917 = vpack.c.bf16 %v899, %v899
    %v918 = vpack.c.bf16 %v903, %v903
    %v919 = vpack.c.bf16 %v905, %v905
    %v920 = vpack.c.bf16 %v909, %v909
    %v921 = vpack.c.bf16 %v911, %v911
    %v923 = vsel %vm220, %v886, 0
    %v926 = vsel %vm220, %v914, 0
    %928 = vmatpush.bf16.xpose.msra.mxu0 0
    %929 = vmatpush.bf16.xpose.msra.mxu0 0
    %930 = vmatpush.bf16.xpose.msra.mxu0 0
    %931 = vmatpush.bf16.xpose.msra.mxu0 0
    %932 = vmatpush.bf16.xpose.msra.mxu0 0
    %933 = vmatpush.bf16.xpose.msra.mxu0 0
    %934 = vmatpush.bf16.xpose.msra.mxu0 0
    %935 = vmatpush.bf16.xpose.msra.mxu0 %v926
    %936 = vmatmul.bf16.gmra.mxu0 %v923
    %v937 = vpop.f32.mrf.mxu0
    %v938 = vadd.f32 0.0, %v937
    %v939 = vpop.f32.mrf.mxu0
    %940 = vdwg.mxu0
    %v942 = vsel %vm220, %v887, 0
    %v945 = vsel %vm220, %v915, 0
    %947 = vmatpush.bf16.xpose.msra.mxu0 0
    %948 = vmatpush.bf16.xpose.msra.mxu0 0
    %949 = vmatpush.bf16.xpose.msra.mxu0 0
    %950 = vmatpush.bf16.xpose.msra.mxu0 0
    %951 = vmatpush.bf16.xpose.msra.mxu0 0
    %952 = vmatpush.bf16.xpose.msra.mxu0 0
    %953 = vmatpush.bf16.xpose.msra.mxu0 0
    %954 = vmatpush.bf16.xpose.msra.mxu0 %v945
    %955 = vmatmul.bf16.gmra.mxu0 %v942
    %v956 = vpop.f32.mrf.mxu0
    %v957 = vadd.f32 0.0, %v956
    %v958 = vpop.f32.mrf.mxu0
    %959 = vdwg.mxu0
    %v961 = vsel %vm220, %v888, 0
    %v964 = vsel %vm220, %v916, 0
    %966 = vmatpush.bf16.xpose.msra.mxu0 0
    %967 = vmatpush.bf16.xpose.msra.mxu0 0
    %968 = vmatpush.bf16.xpose.msra.mxu0 0
    %969 = vmatpush.bf16.xpose.msra.mxu0 0
    %970 = vmatpush.bf16.xpose.msra.mxu0 0
    %971 = vmatpush.bf16.xpose.msra.mxu0 0
    %972 = vmatpush.bf16.xpose.msra.mxu0 0
    %973 = vmatpush.bf16.xpose.msra.mxu0 %v964
    %974 = vmatmul.bf16.gmra.mxu0 %v961
    %v975 = vpop.f32.mrf.mxu0
    %v976 = vadd.f32 0.0, %v975
    %v977 = vpop.f32.mrf.mxu0
    %978 = vdwg.mxu0
    %v980 = vsel %vm220, %v889, 0
    %v983 = vsel %vm220, %v917, 0
    %985 = vmatpush.bf16.xpose.msra.mxu0 0
    %986 = vmatpush.bf16.xpose.msra.mxu0 0
    %987 = vmatpush.bf16.xpose.msra.mxu0 0
    %988 = vmatpush.bf16.xpose.msra.mxu0 0
    %989 = vmatpush.bf16.xpose.msra.mxu0 0
    %990 = vmatpush.bf16.xpose.msra.mxu0 0
    %991 = vmatpush.bf16.xpose.msra.mxu0 0
    %992 = vmatpush.bf16.xpose.msra.mxu0 %v983
    %993 = vmatmul.bf16.gmra.mxu0 %v980
    %v994 = vpop.f32.mrf.mxu0
    %v995 = vadd.f32 0.0, %v994
    %v996 = vpop.f32.mrf.mxu0
    %997 = vdwg.mxu0
    %v999 = vsel %vm220, %v890, 0
    %v1002 = vsel %vm220, %v918, 0
    %1004 = vmatpush.bf16.xpose.msra.mxu0 0
    %1005 = vmatpush.bf16.xpose.msra.mxu0 0
    %1006 = vmatpush.bf16.xpose.msra.mxu0 0
    %1007 = vmatpush.bf16.xpose.msra.mxu0 0
    %1008 = vmatpush.bf16.xpose.msra.mxu0 0
    %1009 = vmatpush.bf16.xpose.msra.mxu0 0
    %1010 = vmatpush.bf16.xpose.msra.mxu0 0
    %1011 = vmatpush.bf16.xpose.msra.mxu0 %v1002
    %1012 = vmatmul.bf16.gmra.mxu0 %v999
    %v1013 = vpop.f32.mrf.mxu0
    %v1014 = vadd.f32 0.0, %v1013
    %v1015 = vpop.f32.mrf.mxu0
    %1016 = vdwg.mxu0
    %v1018 = vsel %vm220, %v891, 0
    %v1021 = vsel %vm220, %v919, 0
    %1023 = vmatpush.bf16.xpose.msra.mxu0 0
    %1024 = vmatpush.bf16.xpose.msra.mxu0 0
    %1025 = vmatpush.bf16.xpose.msra.mxu0 0
    %1026 = vmatpush.bf16.xpose.msra.mxu0 0
    %1027 = vmatpush.bf16.xpose.msra.mxu0 0
    %1028 = vmatpush.bf16.xpose.msra.mxu0 0
    %1029 = vmatpush.bf16.xpose.msra.mxu0 0
    %1030 = vmatpush.bf16.xpose.msra.mxu0 %v1021
    %1031 = vmatmul.bf16.gmra.mxu0 %v1018
    %v1032 = vpop.f32.mrf.mxu0
    %v1033 = vadd.f32 0.0, %v1032
    %v1034 = vpop.f32.mrf.mxu0
    %1035 = vdwg.mxu0
    %v1037 = vsel %vm220, %v892, 0
    %v1040 = vsel %vm220, %v920, 0
    %1042 = vmatpush.bf16.xpose.msra.mxu0 0
    %1043 = vmatpush.bf16.xpose.msra.mxu0 0
    %1044 = vmatpush.bf16.xpose.msra.mxu0 0
    %1045 = vmatpush.bf16.xpose.msra.mxu0 0
    %1046 = vmatpush.bf16.xpose.msra.mxu0 0
    %1047 = vmatpush.bf16.xpose.msra.mxu0 0
    %1048 = vmatpush.bf16.xpose.msra.mxu0 0
    %1049 = vmatpush.bf16.xpose.msra.mxu0 %v1040
    %1050 = vmatmul.bf16.gmra.mxu0 %v1037
    %v1051 = vpop.f32.mrf.mxu0
    %v1052 = vadd.f32 0.0, %v1051
    %v1053 = vpop.f32.mrf.mxu0
    %1054 = vdwg.mxu0
    %v1056 = vsel %vm220, %v893, 0
    %v1059 = vsel %vm220, %v921, 0
    %1061 = vmatpush.bf16.xpose.msra.mxu0 0
    %1062 = vmatpush.bf16.xpose.msra.mxu0 0
    %1063 = vmatpush.bf16.xpose.msra.mxu0 0
    %1064 = vmatpush.bf16.xpose.msra.mxu0 0
    %1065 = vmatpush.bf16.xpose.msra.mxu0 0
    %1066 = vmatpush.bf16.xpose.msra.mxu0 0
    %1067 = vmatpush.bf16.xpose.msra.mxu0 0
    %1068 = vmatpush.bf16.xpose.msra.mxu0 %v1059
    %1069 = vmatmul.bf16.gmra.mxu0 %v1056
    %v1070 = vpop.f32.mrf.mxu0
    %v1071 = vadd.f32 0.0, %v1070
    %v1072 = vpop.f32.mrf.mxu0
    %1073 = vdwg.mxu0
    %v1074 = vsel %vm220, %v938, -inf
    %1075 = vmax.xlane.f32.xlu0 %v1074
    %v1076 = vpop.xlane.xlu0 %1075
    %v1077 = vsel %vm220, %v957, -inf
    %1078 = vmax.xlane.f32.xlu0 %v1077
    %v1079 = vpop.xlane.xlu0 %1078
    %v1080 = vsel %vm220, %v976, -inf
    %1081 = vmax.xlane.f32.xlu0 %v1080
    %v1082 = vpop.xlane.xlu0 %1081
    %v1083 = vsel %vm220, %v995, -inf
    %1084 = vmax.xlane.f32.xlu0 %v1083
    %v1085 = vpop.xlane.xlu0 %1084
    %v1086 = vsel %vm220, %v1014, -inf
    %1087 = vmax.xlane.f32.xlu0 %v1086
    %v1088 = vpop.xlane.xlu0 %1087
    %v1089 = vsel %vm220, %v1033, -inf
    %1090 = vmax.xlane.f32.xlu0 %v1089
    %v1091 = vpop.xlane.xlu0 %1090
    %v1092 = vsel %vm220, %v1052, -inf
    %1093 = vmax.xlane.f32.xlu0 %v1092
    %v1094 = vpop.xlane.xlu0 %1093
    %v1095 = vsel %vm220, %v1071, -inf
    %1096 = vmax.xlane.f32.xlu0 %v1095
    %v1097 = vpop.xlane.xlu0 %1096
    %v1098 = vsub.f32 %v938, %v1076
    %v1099 = vsub.f32 %v957, %v1079
    %v1100 = vsub.f32 %v976, %v1082
    %v1101 = vsub.f32 %v995, %v1085
    %v1102 = vsub.f32 %v1014, %v1088
    %v1103 = vsub.f32 %v1033, %v1091
    %v1104 = vsub.f32 %v1052, %v1094
    %v1105 = vsub.f32 %v1071, %v1097
    %v1106 = vmul.f32 %v1098, 1.442695
    %v1107 = vpow.pop %v1106
    %v1108 = vmul.f32 %v1099, 1.442695
    %v1109 = vpow.pop %v1108
    %v1110 = vmul.f32 %v1100, 1.442695
    %v1111 = vpow.pop %v1110
    %v1112 = vmul.f32 %v1101, 1.442695
    %v1113 = vpow.pop %v1112
    %v1114 = vmul.f32 %v1102, 1.442695
    %v1115 = vpow.pop %v1114
    %v1116 = vmul.f32 %v1103, 1.442695
    %v1117 = vpow.pop %v1116
    %v1118 = vmul.f32 %v1104, 1.442695
    %v1119 = vpow.pop %v1118
    %v1120 = vmul.f32 %v1105, 1.442695
    %v1121 = vpow.pop %v1120
    %v1122 = vsel %vm220, %v1107, 0.0
    %1123 = vadd.xlane.f32.xlu0 %v1122
    %v1124 = vpop.xlane.xlu0 %1123
    %v1125 = vsel %vm220, %v1109, 0.0
    %1126 = vadd.xlane.f32.xlu0 %v1125
    %v1127 = vpop.xlane.xlu0 %1126
    %v1128 = vsel %vm220, %v1111, 0.0
    %1129 = vadd.xlane.f32.xlu0 %v1128
    %v1130 = vpop.xlane.xlu0 %1129
    %v1131 = vsel %vm220, %v1113, 0.0
    %1132 = vadd.xlane.f32.xlu0 %v1131
    %v1133 = vpop.xlane.xlu0 %1132
    %v1134 = vsel %vm220, %v1115, 0.0
    %1135 = vadd.xlane.f32.xlu0 %v1134
    %v1136 = vpop.xlane.xlu0 %1135
    %v1137 = vsel %vm220, %v1117, 0.0
    %1138 = vadd.xlane.f32.xlu0 %v1137
    %v1139 = vpop.xlane.xlu0 %1138
    %v1140 = vsel %vm220, %v1119, 0.0
    %1141 = vadd.xlane.f32.xlu0 %v1140
    %v1142 = vpop.xlane.xlu0 %1141
    %v1143 = vsel %vm220, %v1121, 0.0
    %1144 = vadd.xlane.f32.xlu0 %v1143
    %v1145 = vpop.xlane.xlu0 %1144
    %v1146 = vrcp.pop %v1124
    %v1147 = vrcp.pop %v1127
    %v1148 = vrcp.pop %v1130
    %v1149 = vrcp.pop %v1133
    %v1150 = vrcp.pop %v1136
    %v1151 = vrcp.pop %v1139
    %v1152 = vrcp.pop %v1142
    %v1153 = vrcp.pop %v1145
    %v1154 = vmul.f32 %v1107, %v1146
    %v1155 = vmul.f32 %v1109, %v1147
    %v1156 = vmul.f32 %v1111, %v1148
    %v1157 = vmul.f32 %v1113, %v1149
    %v1158 = vmul.f32 %v1115, %v1150
    %v1159 = vmul.f32 %v1117, %v1151
    %v1160 = vmul.f32 %v1119, %v1152
    %v1161 = vmul.f32 %v1121, %v1153
    %v1162 = vpack.c.bf16 %v1154, %v1154
    %v1163 = vpack.c.bf16 %v1155, %v1155
    %v1164 = vpack.c.bf16 %v1156, %v1156
    %v1165 = vpack.c.bf16 %v1157, %v1157
    %v1166 = vpack.c.bf16 %v1158, %v1158
    %v1167 = vpack.c.bf16 %v1159, %v1159
    %v1168 = vpack.c.bf16 %v1160, %v1160
    %v1169 = vpack.c.bf16 %v1161, %v1161
    %v1171 = vunpack.c.l.b16 %v914
    %v1172 = vpack.c.b16 %v1171, %v1171
    %1173 = vrot.lane.b32.xlu0 %v1172, 96
    %v1174 = vpop.permute.xlu0 %1173
    %v1176 = vsel %vm220, %v1162, 0
    %v1179 = vsel %vm509, %v1174, 0
    %1181 = vmatpush.bf16.msra.mxu0 0
    %1182 = vmatpush.bf16.msra.mxu0 0
    %1183 = vmatpush.bf16.msra.mxu0 0
    %1184 = vmatpush.bf16.msra.mxu0 0
    %1185 = vmatpush.bf16.msra.mxu0 0
    %1186 = vmatpush.bf16.msra.mxu0 0
    %1187 = vmatpush.bf16.msra.mxu0 0
    %1188 = vmatpush.bf16.msra.mxu0 %v1179
    %1189 = vmatmul.bf16.gmra.mxu0 %v1176
    %v1190 = vpop.f32.mrf.mxu0
    %v1191 = vadd.f32 0.0, %v1190
    %v1192 = vpop.f32.mrf.mxu0
    %1193 = vdwg.mxu0
    %v1195 = vunpack.c.l.b16 %v915
    %v1196 = vpack.c.b16 %v1195, %v1195
    %1197 = vrot.lane.b32.xlu0 %v1196, 96
    %v1198 = vpop.permute.xlu0 %1197
    %v1200 = vsel %vm220, %v1163, 0
    %v1203 = vsel %vm509, %v1198, 0
    %1205 = vmatpush.bf16.msra.mxu0 0
    %1206 = vmatpush.bf16.msra.mxu0 0
    %1207 = vmatpush.bf16.msra.mxu0 0
    %1208 = vmatpush.bf16.msra.mxu0 0
    %1209 = vmatpush.bf16.msra.mxu0 0
    %1210 = vmatpush.bf16.msra.mxu0 0
    %1211 = vmatpush.bf16.msra.mxu0 0
    %1212 = vmatpush.bf16.msra.mxu0 %v1203
    %1213 = vmatmul.bf16.gmra.mxu0 %v1200
    %v1214 = vpop.f32.mrf.mxu0
    %v1215 = vadd.f32 0.0, %v1214
    %v1216 = vpop.f32.mrf.mxu0
    %1217 = vdwg.mxu0
    %v1219 = vunpack.c.l.b16 %v916
    %v1220 = vpack.c.b16 %v1219, %v1219
    %1221 = vrot.lane.b32.xlu0 %v1220, 96
    %v1222 = vpop.permute.xlu0 %1221
    %v1224 = vsel %vm220, %v1164, 0
    %v1227 = vsel %vm509, %v1222, 0
    %1229 = vmatpush.bf16.msra.mxu0 0
    %1230 = vmatpush.bf16.msra.mxu0 0
    %1231 = vmatpush.bf16.msra.mxu0 0
    %1232 = vmatpush.bf16.msra.mxu0 0
    %1233 = vmatpush.bf16.msra.mxu0 0
    %1234 = vmatpush.bf16.msra.mxu0 0
    %1235 = vmatpush.bf16.msra.mxu0 0
    %1236 = vmatpush.bf16.msra.mxu0 %v1227
    %1237 = vmatmul.bf16.gmra.mxu0 %v1224
    %v1238 = vpop.f32.mrf.mxu0
    %v1239 = vadd.f32 0.0, %v1238
    %v1240 = vpop.f32.mrf.mxu0
    %1241 = vdwg.mxu0
    %v1243 = vunpack.c.l.b16 %v917
    %v1244 = vpack.c.b16 %v1243, %v1243
    %1245 = vrot.lane.b32.xlu0 %v1244, 96
    %v1246 = vpop.permute.xlu0 %1245
    %v1248 = vsel %vm220, %v1165, 0
    %v1251 = vsel %vm509, %v1246, 0
    %1253 = vmatpush.bf16.msra.mxu0 0
    %1254 = vmatpush.bf16.msra.mxu0 0
    %1255 = vmatpush.bf16.msra.mxu0 0
    %1256 = vmatpush.bf16.msra.mxu0 0
    %1257 = vmatpush.bf16.msra.mxu0 0
    %1258 = vmatpush.bf16.msra.mxu0 0
    %1259 = vmatpush.bf16.msra.mxu0 0
    %1260 = vmatpush.bf16.msra.mxu0 %v1251
    %1261 = vmatmul.bf16.gmra.mxu0 %v1248
    %v1262 = vpop.f32.mrf.mxu0
    %v1263 = vadd.f32 0.0, %v1262
    %v1264 = vpop.f32.mrf.mxu0
    %1265 = vdwg.mxu0
    %v1267 = vunpack.c.l.b16 %v918
    %v1268 = vpack.c.b16 %v1267, %v1267
    %1269 = vrot.lane.b32.xlu0 %v1268, 96
    %v1270 = vpop.permute.xlu0 %1269
    %v1272 = vsel %vm220, %v1166, 0
    %v1275 = vsel %vm509, %v1270, 0
    %1277 = vmatpush.bf16.msra.mxu0 0
    %1278 = vmatpush.bf16.msra.mxu0 0
    %1279 = vmatpush.bf16.msra.mxu0 0
    %1280 = vmatpush.bf16.msra.mxu0 0
    %1281 = vmatpush.bf16.msra.mxu0 0
    %1282 = vmatpush.bf16.msra.mxu0 0
    %1283 = vmatpush.bf16.msra.mxu0 0
    %1284 = vmatpush.bf16.msra.mxu0 %v1275
    %1285 = vmatmul.bf16.gmra.mxu0 %v1272
    %v1286 = vpop.f32.mrf.mxu0
    %v1287 = vadd.f32 0.0, %v1286
    %v1288 = vpop.f32.mrf.mxu0
    %1289 = vdwg.mxu0
    %v1291 = vunpack.c.l.b16 %v919
    %v1292 = vpack.c.b16 %v1291, %v1291
    %1293 = vrot.lane.b32.xlu0 %v1292, 96
    %v1294 = vpop.permute.xlu0 %1293
    %v1296 = vsel %vm220, %v1167, 0
    %v1299 = vsel %vm509, %v1294, 0
    %1301 = vmatpush.bf16.msra.mxu0 0
    %1302 = vmatpush.bf16.msra.mxu0 0
    %1303 = vmatpush.bf16.msra.mxu0 0
    %1304 = vmatpush.bf16.msra.mxu0 0
    %1305 = vmatpush.bf16.msra.mxu0 0
    %1306 = vmatpush.bf16.msra.mxu0 0
    %1307 = vmatpush.bf16.msra.mxu0 0
    %1308 = vmatpush.bf16.msra.mxu0 %v1299
    %1309 = vmatmul.bf16.gmra.mxu0 %v1296
    %v1310 = vpop.f32.mrf.mxu0
    %v1311 = vadd.f32 0.0, %v1310
    %v1312 = vpop.f32.mrf.mxu0
    %1313 = vdwg.mxu0
    %v1315 = vunpack.c.l.b16 %v920
    %v1316 = vpack.c.b16 %v1315, %v1315
    %1317 = vrot.lane.b32.xlu0 %v1316, 96
    %v1318 = vpop.permute.xlu0 %1317
    %v1320 = vsel %vm220, %v1168, 0
    %v1323 = vsel %vm509, %v1318, 0
    %1325 = vmatpush.bf16.msra.mxu0 0
    %1326 = vmatpush.bf16.msra.mxu0 0
    %1327 = vmatpush.bf16.msra.mxu0 0
    %1328 = vmatpush.bf16.msra.mxu0 0
    %1329 = vmatpush.bf16.msra.mxu0 0
    %1330 = vmatpush.bf16.msra.mxu0 0
    %1331 = vmatpush.bf16.msra.mxu0 0
    %1332 = vmatpush.bf16.msra.mxu0 %v1323
    %1333 = vmatmul.bf16.gmra.mxu0 %v1320
    %v1334 = vpop.f32.mrf.mxu0
    %v1335 = vadd.f32 0.0, %v1334
    %v1336 = vpop.f32.mrf.mxu0
    %1337 = vdwg.mxu0
    %v1339 = vunpack.c.l.b16 %v921
    %v1340 = vpack.c.b16 %v1339, %v1339
    %1341 = vrot.lane.b32.xlu0 %v1340, 96
    %v1342 = vpop.permute.xlu0 %1341
    %v1344 = vsel %vm220, %v1169, 0
    %v1347 = vsel %vm509, %v1342, 0
    %1349 = vmatpush.bf16.msra.mxu0 0
    %1350 = vmatpush.bf16.msra.mxu0 0
    %1351 = vmatpush.bf16.msra.mxu0 0
    %1352 = vmatpush.bf16.msra.mxu0 0
    %1353 = vmatpush.bf16.msra.mxu0 0
    %1354 = vmatpush.bf16.msra.mxu0 0
    %1355 = vmatpush.bf16.msra.mxu0 0
    %1356 = vmatpush.bf16.msra.mxu0 %v1347
    %1357 = vmatmul.bf16.gmra.mxu0 %v1344
    %v1358 = vpop.f32.mrf.mxu0
    %v1359 = vadd.f32 0.0, %v1358
    %v1360 = vpop.f32.mrf.mxu0
    %1361 = vdwg.mxu0
    %1364 = vrot.lane.b32.xlu0 %v1239, 8
    %v1365 = vpop.permute.xlu0 %1364
    %1366 = vrot.lane.b32.xlu0 %v1263, 8
    %v1367 = vpop.permute.xlu0 %1366
    %1372 = vrot.lane.b32.xlu0 %v1287, 16
    %v1373 = vpop.permute.xlu0 %1372
    %1374 = vrot.lane.b32.xlu0 %v1311, 16
    %v1375 = vpop.permute.xlu0 %1374
    %1380 = vrot.lane.b32.xlu0 %v1335, 24
    %v1381 = vpop.permute.xlu0 %1380
    %1382 = vrot.lane.b32.xlu0 %v1359, 24
    %v1383 = vpop.permute.xlu0 %1382
    %v1386 = vsel %vm220, %v1191, %v1365
    %v1387 = vsel %vm220, %v1215, %v1367
    %v1388 = vsel %vm699, %v1386, %v1373
    %v1389 = vsel %vm699, %v1387, %v1375
    %v1390 = vsel %vm702, %v1388, %v1381
    %v1391 = vsel %vm702, %v1389, %v1383
    %v1392 = vld [vmem:[%s3 + $0x4] sm:$0xf]
    %v1393 = vld [vmem:[%s3 + $0x10] sm:$0xf]
    %v1394 = vld [vmem:[%s3 + $0x1c] sm:$0xf]
    %v1395 = vld [vmem:[%s3 + $0x28] sm:$0xf]
    %v1396 = vpack.c.bf16 %v1391, %v1390
    %v1397 = vld [vmem:[#allocation8 + $0x2] ss:$0 sm:$0xff]
    %v1402 = vunpack.c.l.b16 %v1392
    %v1403 = vunpack.c.l.b16 %v1393
    %v1404 = vunpack.c.l.b16 %v1394
    %v1405 = vunpack.c.l.b16 %v1395
    %v1406 = vpack.c.b16 %v1403, %v1402
    %v1407 = vpack.c.b16 %v1405, %v1404
    %1408 = vrot.lane.b32.xlu0 %v1406, 32
    %v1409 = vpop.permute.xlu0 %1408
    %1410 = vrot.lane.b32.xlu0 %v1407, 32
    %v1411 = vpop.permute.xlu0 %1410
    %v1415 = vsel %vm90, %v1396, 0
    %1417 = vmatpush.bf16.msra.mxu0 0
    %1418 = vmatpush.bf16.msra.mxu0 0
    %1419 = vmatpush.bf16.msra.mxu0 0
    %1420 = vmatpush.bf16.msra.mxu0 0
    %1421 = vmatpush.bf16.msra.mxu0 0
    %1422 = vmatpush.bf16.msra.mxu0 0
    %1423 = vmatpush.bf16.msra.mxu0 %v1411
    %1424 = vmatpush.bf16.msra.mxu0 %v1409
    %1425 = vmatmul.bf16.gmra.mxu0 %v1415
    %v1426 = vpop.f32.mrf.mxu0
    %v1427 = vadd.f32 %v1397, %v1426
    %v1428 = vpop.f32.mrf.mxu0
    %v1429 = vadd.f32 %v1397, %v1428
    %1430 = vdwg.mxu0
    %v1431 = vadd.f32 %v1427, %v744
    %v1432 = vadd.f32 %v1429, %v745
    %v1433 = vld [vmem:[#allocation7 + $0x4] sm:$0x1]
    %v1434 = vld [vmem:[#allocation7 + $0x5] sm:$0x1]
    %v1435 = vsel %vm90, %v1431, 0.0
    %1436 = vadd.xlane.f32.xlu0 %v1435
    %v1437 = vpop.xlane.xlu0 %1436
    %v1438 = vsel %vm90, %v1432, 0.0
    %1439 = vadd.xlane.f32.xlu0 %v1438
    %v1440 = vpop.xlane.xlu0 %1439
    %v1441 = vmul.f32 %v1437, %v103
    %v1442 = vmul.f32 %v1440, %v103
    %v1443 = vmul.f32 %v1431, %v1431
    %v1444 = vmul.f32 %v1432, %v1432
    %v1445 = vsel %vm90, %v1443, 0.0
    %1446 = vadd.xlane.f32.xlu0 %v1445
    %v1447 = vpop.xlane.xlu0 %1446
    %v1448 = vsel %vm90, %v1444, 0.0
    %1449 = vadd.xlane.f32.xlu0 %v1448
    %v1450 = vpop.xlane.xlu0 %1449
    %v1451 = vmul.f32 %v1447, %v103
    %v1452 = vmul.f32 %v1450, %v103
    %v1453 = vmul.f32 %v1441, %v1441
    %v1454 = vmul.f32 %v1442, %v1442
    %v1455 = vsub.f32 %v1451, %v1453
    %v1456 = vsub.f32 %v1452, %v1454
    %v1457 = vsub.f32 %v1431, %v1441
    %v1458 = vsub.f32 %v1432, %v1442
    %v1459 = vadd.f32 %v1455, 1e-06
    %v1460 = vadd.f32 %v1456, 1e-06
    %v1461 = vrsqrt.pop %v1459
    %v1462 = vmul.f32 %v1461, %v1459
    %v1463 = vmul.f32 %v1462, %v1461
    %v1464 = vmul.f32 0.5, %v1463
    %v1465 = vsub.f32 1.5, %v1464
    %v1466 = vmul.f32 %v1461, %v1465
    %vm1467 = vweird.f32 %v1459
    %vm1468 = vweird.f32 %v1461
    %vm1469 = vmor %vm1467, %vm1468
    %v1470 = vsel %vm1469, %v1461, %v1466
    %v1471 = vrsqrt.pop %v1460
    %v1472 = vmul.f32 %v1471, %v1460
    %v1473 = vmul.f32 %v1472, %v1471
    %v1474 = vmul.f32 0.5, %v1473
    %v1475 = vsub.f32 1.5, %v1474
    %v1476 = vmul.f32 %v1471, %v1475
    %vm1477 = vweird.f32 %v1460
    %vm1478 = vweird.f32 %v1471
    %vm1479 = vmor %vm1477, %vm1478
    %v1480 = vsel %vm1479, %v1471, %v1476
    %v1481 = vmul.f32 %v1457, %v1470
    %v1482 = vmul.f32 %v1458, %v1480
    %v1483 = vperm.slane %v1433, 0
    %v1484 = vmul.f32 %v1481, %v1483
    %v1485 = vmul.f32 %v1482, %v1483
    %v1486 = vperm.slane %v1434, 0
    %v1487 = vadd.f32 %v1484, %v1486
    %v1488 = vadd.f32 %v1485, %v1486
    %v1489 = vld [vmem:[%s3 + $0x8] sm:$0xf]
    %v1490 = vld [vmem:[%s3 + $0x14] sm:$0xf]
    %v1491 = vld [vmem:[%s3 + $0x20] sm:$0xf]
    %v1492 = vld [vmem:[%s3 + $0x2c] sm:$0xf]
    %v1493 = vpack.c.bf16 %v1488, %v1487
    %v1494 = vld [vmem:[#allocation8 + $0x3] ss:$0 sm:$0xff]
    %v1499 = vunpack.c.l.b16 %v1489
    %v1500 = vunpack.c.l.b16 %v1490
    %v1501 = vunpack.c.l.b16 %v1491
    %v1502 = vunpack.c.l.b16 %v1492
    %v1503 = vpack.c.b16 %v1500, %v1499
    %v1504 = vpack.c.b16 %v1502, %v1501
    %v1508 = vsel %vm90, %v1493, 0
    %1510 = vmatpush.bf16.msra.mxu0 0
    %1511 = vmatpush.bf16.msra.mxu0 0
    %1512 = vmatpush.bf16.msra.mxu0 0
    %1513 = vmatpush.bf16.msra.mxu0 0
    %1514 = vmatpush.bf16.msra.mxu0 0
    %1515 = vmatpush.bf16.msra.mxu0 0
    %1516 = vmatpush.bf16.msra.mxu0 %v1504
    %1517 = vmatpush.bf16.msra.mxu0 %v1503
    %1518 = vmatmul.bf16.gmra.mxu0 %v1508
    %v1519 = vpop.f32.mrf.mxu0
    %v1520 = vadd.f32 %v1494, %v1519
    %v1521 = vpop.f32.mrf.mxu0
    %v1522 = vadd.f32 %v1494, %v1521
    %1523 = vdwg.mxu0
    %v1524 = vmax.f32 %v1520, 0.0
    %v1525 = vmax.f32 %v1522, 0.0
    %v1526 = vld [vmem:[%s4] sm:$0xf]
    %v1527 = vld [vmem:[%s4 + $0x4] sm:$0xf]
    %v1528 = vld [vmem:[%s4 + $0x8] sm:$0xf]
    %v1529 = vld [vmem:[%s4 + $0xc] sm:$0xf]
    %v1530 = vld [vmem:[%s4 + $0x10] sm:$0xf]
    %v1531 = vld [vmem:[%s4 + $0x14] sm:$0xf]
    %v1532 = vld [vmem:[%s4 + $0x18] sm:$0xf]
    %v1533 = vld [vmem:[%s4 + $0x1c] sm:$0xf]
    %v1534 = vpack.c.bf16 %v1525, %v1524
    %v1535 = vld [vmem:[#allocation8 + $0x4] ss:$0 sm:$0xff]
    %v1544 = vunpack.c.l.b16 %v1526
    %v1545 = vunpack.c.l.b16 %v1527
    %v1546 = vunpack.c.l.b16 %v1528
    %v1547 = vunpack.c.l.b16 %v1529
    %v1548 = vunpack.c.l.b16 %v1530
    %v1549 = vunpack.c.l.b16 %v1531
    %v1550 = vunpack.c.l.b16 %v1532
    %v1551 = vunpack.c.l.b16 %v1533
    %v1552 = vpack.c.b16 %v1545, %v1544
    %v1553 = vpack.c.b16 %v1547, %v1546
    %v1554 = vpack.c.b16 %v1549, %v1548
    %v1555 = vpack.c.b16 %v1551, %v1550
    %vm1560 = vcmask 523264
    %v1562 = vsel %vm1560, %v1534, 0
    %1564 = vmatpush.bf16.msra.mxu0 0
    %1565 = vmatpush.bf16.msra.mxu0 0
    %1566 = vmatpush.bf16.msra.mxu0 0
    %1567 = vmatpush.bf16.msra.mxu0 0
    %1568 = vmatpush.bf16.msra.mxu0 %v1555
    %1569 = vmatpush.bf16.msra.mxu0 %v1554
    %1570 = vmatpush.bf16.msra.mxu0 %v1553
    %1571 = vmatpush.bf16.msra.mxu0 %v1552
    %1572 = vmatmul.bf16.gmra.mxu0 %v1562
    %v1573 = vpop.f32.mrf.mxu0
    %v1574 = vadd.f32 %v1535, %v1573
    %v1575 = vpop.f32.mrf.mxu0
    %v1576 = vadd.f32 %v1535, %v1575
    %1577 = vdwg.mxu0
    %v1578 = vadd.f32 %v1431, %v1574
    %v1579 = vadd.f32 %v1432, %v1576
    %1580 = vst.msk [vmem:[#allocation10] sm:$0xff] %vm90, %v1578
    %1581 = vst.msk [vmem:[#allocation10 + $0x8] sm:$0xff] %vm90, %v1579
    // Predicated region
    $region42: #{tpu_custom_call.1} parent=1 // pred_check
      _
    $region43: #{tpu_custom_call.1} parent=1 // pred_check_branch
      %1583 = sbr.rel (0) target = $region45
    $region44: #{tpu_custom_call.1} parent=1 // pred_region
      %1585 = vsyncadd [#allocation4], 0
      %s1586 = sshll.u32 [#allocation10], 4
      %s1587 = int_to_ptr.vmem [resolvable:$true] %s1586
      %s1588 = sshll.u32 %s6, 4
      %s1589 = int_to_ptr.hbm [resolvable:$true] %s1588
      %1594 = dma.vmem_to_hbm [thread:$0]  %s1587, 256, %s1589, [#allocation4], 128, 128, 8
    $region45: #{tpu_custom_call.1} parent=1 // pred_fallthru
      _
    // Predicated region
    $region46: #{tpu_custom_call.1} parent=1 // pred_check
      _
    $region47: #{tpu_custom_call.1} parent=1 // pred_check_branch
      %1596 = sbr.rel (0) target = $region49
    $region48: #{tpu_custom_call.1} parent=1 // pred_region
      %1598 = dma.done [#allocation4], 256
    $region49: #{tpu_custom_call.1} parent=1 // pred_fallthru
      _
    %1599 = vsyncpa [#allocation3], 1
    %1600 = vsyncpa [#allocation6], 1
    %1601 = vsyncpa [#allocation9], 1
    %1602 = vsyncpa [#allocation4], 1

</llo_original>
